<compile_context>
chip_gen: v7x
topology: tpu7x:2x2x1
jax: 0.10.0
libtpu: 0.0.40
codegen_flags: <defaults>
</compile_context>

<pallas_src>
import functools
import math

import jax
import jax.numpy as jnp
from jax.experimental import pallas as pl
from jax.experimental.pallas import tpu as pltpu

TORCHAUDIO_SQUEEZER = 14.0
N_MFCC = 128
N_MELS = 128

# Largest time tile (MXU matmul columns) streamed per grid step.  f32 footprint
# at tl=8192, tb=1: double-buffered (x + out) = 2*(4+4) MiB = 16 MiB + 2*64 KiB
# weight.  We raise the scoped-VMEM limit explicitly so this fits under v5e's
# 16 MiB default scoped limit and stays well below v7x's 64 MiB physical VMEM.
_MAX_TL = 8192
# Max batch elements fused into one grid step (static unroll inside the kernel).
_MAX_TB = 16
# Aim for ~2 MiB of x per grid step so DMA time dominates per-step overhead.
_TARGET_X_BYTES_PER_STEP = 2 << 20


def make_dct_weight(dtype=jnp.float32):
    """torchaudio.functional.create_dct(n_mfcc=128, n_mels=128, norm=None),
    then the module's transpose / [0:128] slice / unsqueeze / divide-by-14.

    Conv weight W[k, n] = 2 * cos(pi / n_mels * (n + 0.5) * k) / 14
    (kernel_size=1 dim dropped: the conv is a pure channel mixing)."""
    n = jnp.arange(N_MELS, dtype=jnp.float32)            # mel index
    k = jnp.arange(N_MFCC, dtype=jnp.float32)[:, None]   # mfcc index
    w = 2.0 * jnp.cos(math.pi / float(N_MELS) * (n + 0.5) * k)
    w = w / TORCHAUDIO_SQUEEZER
    return w.astype(dtype)                                # (out_ch=128, in_ch=128)


def _dct4_kernel(w_ref, x_ref, o_ref, *, tb, precision):
    # w_ref: (128, 128) VMEM, resident across the whole grid (constant index map)
    # x_ref / o_ref: (tb, 128, tl) batch/time tile of the NCL tensor.
    w = w_ref[...]
    for b in range(tb):  # static unroll over fused batch elements
        o_ref[b, :, :] = jnp.dot(
            w,
            x_ref[b, :, :],
            preferred_element_type=jnp.float32,
            precision=precision,
        ).astype(o_ref.dtype)


def _round_up(x, m):
    return (x + m - 1) // m * m


def dct4_torchaudio(x, w):
    """out[b, k, t] = sum_n W[k, n] * x[b, n, t];  x: (B, 128, L) -> (B, 128, L)."""
    B, C, L = x.shape
    assert C == N_MELS
    out_dtype = x.dtype
    x_itemsize = jnp.dtype(x.dtype).itemsize
    o_itemsize = jnp.dtype(out_dtype).itemsize
    w_bytes = N_MFCC * N_MELS * jnp.dtype(w.dtype).itemsize

    # Time tile: as large as possible (<= _MAX_TL), multiple of 128 so every
    # output tile is lane-dense.  No materialized pad: the ragged final block
    # is clamped by Pallas (OOB reads are garbage columns that only feed OOB
    # output columns, whose writeback is dropped).
    tl = min(_MAX_TL, _round_up(L, 128))

    # Batch tile: fuse batch elements when L is small so each grid step moves
    # >= ~2 MiB of x and the fixed per-step overhead is amortized.
    per_batch_bytes = N_MELS * tl * x_itemsize
    tb = int(max(1, min(B, _MAX_TB, _TARGET_X_BYTES_PER_STEP // per_batch_bytes)))

    grid = (pl.cdiv(B, tb), pl.cdiv(L, tl))

    # Full-fidelity f32 MXU path for f32 inputs (matches a true f32 PyTorch
    # reference); the kernel stays memory-bound either way.  bf16 inputs use
    # the default single-pass path.
    precision = jax.lax.Precision.HIGHEST if x.dtype == jnp.float32 else None
    kernel = functools.partial(_dct4_kernel, tb=tb, precision=precision)

    # Double-buffered pipeline footprint + headroom.
    x_blk = tb * N_MELS * tl * x_itemsize
    o_blk = tb * N_MFCC * tl * o_itemsize
    vmem_limit = int(min(2 * (x_blk + o_blk) + 2 * w_bytes + (6 << 20), 48 << 20))

    cost = pl.CostEstimate(
        flops=2 * N_MFCC * N_MELS * B * L,
        transcendentals=0,
        bytes_accessed=(
            B * N_MELS * L * x_itemsize          # read x once
            + B * N_MFCC * L * o_itemsize        # write out once
            + w_bytes                            # read W once
        ),
    )

    return pl.pallas_call(
        kernel,
        out_shape=jax.ShapeDtypeStruct((B, N_MFCC, L), out_dtype),
        grid_spec=pltpu.PrefetchScalarGridSpec(
            num_scalar_prefetch=0,
            grid=grid,
            in_specs=[
                # Weight: constant block index -> stays hot in VMEM, no per-step DMA.
                pl.BlockSpec((N_MFCC, N_MELS), lambda bi, ti: (0, 0)),
                # x: (tb, 128, tl) batch/time tile.
                pl.BlockSpec((tb, N_MELS, tl), lambda bi, ti: (bi, 0, ti)),
            ],
            out_specs=pl.BlockSpec((tb, N_MFCC, tl), lambda bi, ti: (bi, 0, ti)),
        ),
        compiler_params=pltpu.CompilerParams(
            # Both grid axes are independent -> shard across v7x's two TensorCores;
            # harmless no-op on single-TC v5e/v6e.
            dimension_semantics=("parallel", "parallel"),
            vmem_limit_bytes=vmem_limit,
        ),
        cost_estimate=cost,
    )(w, x)


if __name__ == "__main__":
    key = jax.random.PRNGKey(0)
    w = make_dct_weight()
    hi = jax.lax.Precision.HIGHEST

    # Small shape consistent with the module: (B, 128 mel channels, L frames).
    B, L = 2, 128
    x = jax.random.normal(key, (B, N_MELS, L), dtype=jnp.float32)
    out = jax.block_until_ready(dct4_torchaudio(x, w))
    ref = jnp.einsum("kn,bnt->bkt", w, x, precision=hi)
    assert out.shape == (B, N_MFCC, L)
    assert jnp.allclose(out, ref, atol=1e-4, rtol=1e-4)

    # Ragged final time block (L not a multiple of 128), no materialized pad/slice.
    L2 = 200
    x2 = jax.random.normal(jax.random.PRNGKey(1), (B, N_MELS, L2), dtype=jnp.float32)
    out2 = jax.block_until_ready(dct4_torchaudio(x2, w))
    ref2 = jnp.einsum("kn,bnt->bkt", w, x2, precision=hi)
    assert out2.shape == (B, N_MFCC, L2)
    assert jnp.allclose(out2, ref2, atol=1e-4, rtol=1e-4)

    # Batch-blocked path with a ragged final batch block (B > _MAX_TB) and a
    # ragged time block.
    B3, L3 = 20, 160
    x3 = jax.random.normal(jax.random.PRNGKey(2), (B3, N_MELS, L3), dtype=jnp.float32)
    out3 = jax.block_until_ready(dct4_torchaudio(x3, w))
    ref3 = jnp.einsum("kn,bnt->bkt", w, x3, precision=hi)
    assert out3.shape == (B3, N_MFCC, L3)
    assert jnp.allclose(out3, ref3, atol=1e-4, rtol=1e-4)

    print("KERNEL_OK")
</pallas_src>

<mosaic_0001>
module attributes {stable_mosaic.version = 11 : i64} {
  func.func @_dct4_kernel(%arg0: i32, %arg1: i32, %arg2: memref<128x128xf32, #tpu.memory_space<vmem>>, %arg3: memref<2x128x128xf32, #tpu.memory_space<vmem>>, %arg4: memref<2x128x128xf32, #tpu.memory_space<vmem>>) attributes {dimension_semantics = [#tpu.dimension_semantics<parallel>, #tpu.dimension_semantics<parallel>], iteration_bounds = array<i64: 1, 1>, scalar_prefetch = 0 : i64, scratch_operands = 0 : i64, tpu.core_type = #tpu.core_type<tc>, window_params = [{pipeline_mode = #tpu.pipeline_mode<synchronous>, transform_indices = @transform_0, window_bounds = array<i64: 128, 128>}, {transform_indices = @transform_1, window_bounds = array<i64: 2, 128, 128>}, {transform_indices = @transform_2, window_bounds = array<i64: 2, 128, 128>}]} {
    %c0 = arith.constant 0 : index
    %c0_0 = arith.constant 0 : index
    %0 = vector.load %arg2[%c0, %c0_0] : memref<128x128xf32, #tpu.memory_space<vmem>>, vector<128x128xf32>
    %c0_1 = arith.constant 0 : index
    %c0_2 = arith.constant 0 : index
    %c0_3 = arith.constant 0 : index
    %1 = vector.load %arg3[%c0_1, %c0_2, %c0_3] : memref<2x128x128xf32, #tpu.memory_space<vmem>>, vector<1x128x128xf32>
    %2 = vector.shape_cast %1 : vector<1x128x128xf32> to vector<128x128xf32>
    %cst = arith.constant dense<0.000000e+00> : vector<128x128xf32>
    %3 = tpu.matmul %0, %2, %cst {dimension_numbers = #tpu.dot_dimension_numbers<[1], [0], [0], [1], [0, 0, 1, 1], [], []>, precision = #tpu.contract_precision<fp32>} : vector<128x128xf32>, vector<128x128xf32>, vector<128x128xf32> -> vector<128x128xf32>
    %c0_4 = arith.constant 0 : index
    %c0_5 = arith.constant 0 : index
    %c0_6 = arith.constant 0 : index
    %4 = vector.load %arg4[%c0_4, %c0_5, %c0_6] : memref<2x128x128xf32, #tpu.memory_space<vmem>>, vector<1x128x128xf32>
    %5 = vector.shape_cast %4 : vector<1x128x128xf32> to vector<128x128xf32>
    %6 = vector.shape_cast %3 : vector<128x128xf32> to vector<1x128x128xf32>
    tpu.vector_store %arg4[%c0_4, %c0_5, %c0_6], %6 {strides = array<i32>} : memref<2x128x128xf32, #tpu.memory_space<vmem>>, vector<1x128x128xf32>,
    %c1 = arith.constant 1 : index
    %c0_7 = arith.constant 0 : index
    %c0_8 = arith.constant 0 : index
    %7 = vector.load %arg3[%c1, %c0_7, %c0_8] : memref<2x128x128xf32, #tpu.memory_space<vmem>>, vector<1x128x128xf32>
    %8 = vector.shape_cast %7 : vector<1x128x128xf32> to vector<128x128xf32>
    %cst_9 = arith.constant dense<0.000000e+00> : vector<128x128xf32>
    %9 = tpu.matmul %0, %8, %cst_9 {dimension_numbers = #tpu.dot_dimension_numbers<[1], [0], [0], [1], [0, 0, 1, 1], [], []>, precision = #tpu.contract_precision<fp32>} : vector<128x128xf32>, vector<128x128xf32>, vector<128x128xf32> -> vector<128x128xf32>
    %c1_10 = arith.constant 1 : index
    %c0_11 = arith.constant 0 : index
    %c0_12 = arith.constant 0 : index
    %10 = vector.load %arg4[%c1_10, %c0_11, %c0_12] : memref<2x128x128xf32, #tpu.memory_space<vmem>>, vector<1x128x128xf32>
    %11 = vector.shape_cast %10 : vector<1x128x128xf32> to vector<128x128xf32>
    %12 = vector.shape_cast %9 : vector<128x128xf32> to vector<1x128x128xf32>
    tpu.vector_store %arg4[%c1_10, %c0_11, %c0_12], %12 {strides = array<i32>} : memref<2x128x128xf32, #tpu.memory_space<vmem>>, vector<1x128x128xf32>,
    return
  }
  func.func @transform_0(%arg0: i32, %arg1: i32) -> (i32, i32) {
    %c0_i32 = arith.constant 0 : i32
    %c0_i32_0 = arith.constant 0 : i32
    %c0_i32_1 = arith.constant 0 : i32
    return %c0_i32, %c0_i32_0 : i32, i32
  }
  func.func @transform_1(%arg0: i32, %arg1: i32) -> (i32, i32, i32) {
    %c0_i32 = arith.constant 0 : i32
    %c0_i32_0 = arith.constant 0 : i32
    return %arg0, %c0_i32, %arg1 : i32, i32, i32
  }
  func.func @transform_2(%arg0: i32, %arg1: i32) -> (i32, i32, i32) {
    %c0_i32 = arith.constant 0 : i32
    %c0_i32_0 = arith.constant 0 : i32
    return %arg0, %c0_i32, %arg1 : i32, i32, i32
  }
}

</mosaic_0001>

<llo_original>
// kernel: tpu_custom_call.1
$region0: #{tpu_custom_call.1}
  #allocation0 [shape = 'u32[]', space=smem, size = 0x4, offset = 0x4, fixed_abs, tag = 'smem constant byte address 0x4 - core index']
  #allocation1 [shape = 'u32[144,128]{1,0:T(1,128)}', space=vmem, size = 0x12000, scoped, tag = 'internal scratch']
  %s0 = inlined_call_operand.hbm [shape: f32[128,128], index: 0, kind: input, shape index: {}]
  %s1 = inlined_call_operand.hbm [shape: f32[2,128,128], index: 1, kind: input, shape index: {}]
  %s2 = inlined_call_operand.hbm [shape: f32[2,128,128], index: 2, kind: output, shape index: {}]
  %s3 = sld [smem:[#allocation0]]
  $region26: #{tpu_custom_call.1} parent=0
    _
  %s5 = ssub.s32 1, %s3
  %s6 = scalar_select 0, %s5, %s3
  $region1: #{tpu_custom_call.1} parent=0
    #allocation2 [shape = 'u8[65536]{0}', space=vmem, size = 0x10000, scoped, tag = 'input window, operand 0, single buffered']
    #allocation3 [shape = 's32[1]{0}', space=sflag, size = 0x4, scoped, tag = 'scoped memory for tpu_custom_call.1']
    #allocation4 [shape = 's32[1]{0}', space=sflag, size = 0x4, scoped, tag = 'scoped memory for tpu_custom_call.1']
    #allocation5 [shape = 'u8[131072]{0}', space=vmem, size = 0x20000, scoped, tag = 'input window, operand 1, single buffered']
    #allocation6 [shape = 's32[1]{0}', space=sflag, size = 0x4, scoped, tag = 'scoped memory for tpu_custom_call.1']
    #allocation7 [shape = 'u8[131072]{0}', space=vmem, size = 0x20000, scoped, tag = 'output window, operand 0, single buffered']
    %7 = vsyncpa [#allocation3], 0
    %8 = vsyncpa [#allocation6], 0
    %9 = vsyncpa [#allocation4], 0
    // Predicated region
    $region2: #{tpu_custom_call.1} parent=1 // pred_check
      _
    $region3: #{tpu_custom_call.1} parent=1 // pred_check_branch
      %11 = sbr.rel (0) target = $region5
    $region4: #{tpu_custom_call.1} parent=1 // pred_region
      %s13 = ssub.s32 2048, 2048
      %14 = vsyncadd [#allocation3], %s13
      %s15 = sshll.u32 [#allocation2], 4
      %s16 = int_to_ptr.vmem [resolvable:$true] %s15
      %21 = dma.hbm_to_vmem [thread:$0]  %s0, 2048, %s16, [#allocation3], 128, 128, 8
    $region5: #{tpu_custom_call.1} parent=1 // pred_fallthru
      _
    // Predicated region
    $region6: #{tpu_custom_call.1} parent=1 // pred_check
      _
    $region7: #{tpu_custom_call.1} parent=1 // pred_check_branch
      %23 = sbr.rel (0) target = $region9
    $region8: #{tpu_custom_call.1} parent=1 // pred_region
      %s25 = ssub.s32 4096, 4096
      %26 = vsyncadd [#allocation6], %s25
      %s27 = sshll.u32 [#allocation5], 4
      %s28 = int_to_ptr.vmem [resolvable:$true] %s27
      %33 = dma.hbm_to_vmem [thread:$0]  %s1, 4096, %s28, [#allocation6], 128, 128, 8
    $region9: #{tpu_custom_call.1} parent=1 // pred_fallthru
      _
    // Predicated region
    $region10: #{tpu_custom_call.1} parent=1 // pred_check
      _
    $region11: #{tpu_custom_call.1} parent=1 // pred_check_branch
      %35 = sbr.rel (0) target = $region13
    $region12: #{tpu_custom_call.1} parent=1 // pred_region
      %36 = dma.done [#allocation3], 2048
    $region13: #{tpu_custom_call.1} parent=1 // pred_fallthru
      _
    // Predicated region
    $region14: #{tpu_custom_call.1} parent=1 // pred_check
      _
    $region15: #{tpu_custom_call.1} parent=1 // pred_check_branch
      %38 = sbr.rel (0) target = $region17
    $region16: #{tpu_custom_call.1} parent=1 // pred_region
      %39 = dma.done [#allocation6], 4096
    $region17: #{tpu_custom_call.1} parent=1 // pred_fallthru
      _
    %v40 = vld [vmem:[#allocation2] sm:$0xff]
    %v41 = vld [vmem:[#allocation2 + $0x8] sm:$0xff]
    %v42 = vld [vmem:[#allocation2 + $0x10] sm:$0xff]
    %v43 = vld [vmem:[#allocation2 + $0x18] sm:$0xff]
    %v44 = vld [vmem:[#allocation2 + $0x20] sm:$0xff]
    %v45 = vld [vmem:[#allocation2 + $0x28] sm:$0xff]
    %v46 = vld [vmem:[#allocation2 + $0x30] sm:$0xff]
    %v47 = vld [vmem:[#allocation2 + $0x38] sm:$0xff]
    %v48 = vld [vmem:[#allocation2 + $0x40] sm:$0xff]
    %v49 = vld [vmem:[#allocation2 + $0x48] sm:$0xff]
    %v50 = vld [vmem:[#allocation2 + $0x50] sm:$0xff]
    %v51 = vld [vmem:[#allocation2 + $0x58] sm:$0xff]
    %v52 = vld [vmem:[#allocation2 + $0x60] sm:$0xff]
    %v53 = vld [vmem:[#allocation2 + $0x68] sm:$0xff]
    %v54 = vld [vmem:[#allocation2 + $0x70] sm:$0xff]
    %v55 = vld [vmem:[#allocation2 + $0x78] sm:$0xff]
    %v56 = vld [vmem:[#allocation5] sm:$0xff]
    %v57 = vld [vmem:[#allocation5 + $0x8] sm:$0xff]
    %v58 = vld [vmem:[#allocation5 + $0x10] sm:$0xff]
    %v59 = vld [vmem:[#allocation5 + $0x18] sm:$0xff]
    %v60 = vld [vmem:[#allocation5 + $0x20] sm:$0xff]
    %v61 = vld [vmem:[#allocation5 + $0x28] sm:$0xff]
    %v62 = vld [vmem:[#allocation5 + $0x30] sm:$0xff]
    %v63 = vld [vmem:[#allocation5 + $0x38] sm:$0xff]
    %v64 = vld [vmem:[#allocation5 + $0x40] sm:$0xff]
    %v65 = vld [vmem:[#allocation5 + $0x48] sm:$0xff]
    %v66 = vld [vmem:[#allocation5 + $0x50] sm:$0xff]
    %v67 = vld [vmem:[#allocation5 + $0x58] sm:$0xff]
    %v68 = vld [vmem:[#allocation5 + $0x60] sm:$0xff]
    %v69 = vld [vmem:[#allocation5 + $0x68] sm:$0xff]
    %v70 = vld [vmem:[#allocation5 + $0x70] sm:$0xff]
    %v71 = vld [vmem:[#allocation5 + $0x78] sm:$0xff]
    %72 = vmatprep.subr.mxu0 0.0
    %v73 = vand.u32 %v56, 4294901760
    %74 = vmatpush1.msra.mxu0 %v73
    %75 = vmatprep.subr.mxu0 0.0
    %v76 = vand.u32 %v57, 4294901760
    %77 = vmatpush1.msra.mxu0 %v76
    %78 = vmatprep.subr.mxu0 0.0
    %v79 = vand.u32 %v58, 4294901760
    %80 = vmatpush1.msra.mxu0 %v79
    %81 = vmatprep.subr.mxu0 0.0
    %v82 = vand.u32 %v59, 4294901760
    %83 = vmatpush1.msra.mxu0 %v82
    %84 = vmatprep.subr.mxu0 0.0
    %v85 = vand.u32 %v60, 4294901760
    %86 = vmatpush1.msra.mxu0 %v85
    %87 = vmatprep.subr.mxu0 0.0
    %v88 = vand.u32 %v61, 4294901760
    %89 = vmatpush1.msra.mxu0 %v88
    %90 = vmatprep.subr.mxu0 0.0
    %v91 = vand.u32 %v62, 4294901760
    %92 = vmatpush1.msra.mxu0 %v91
    %93 = vmatprep.subr.mxu0 0.0
    %v94 = vand.u32 %v63, 4294901760
    %95 = vmatpush1.msra.mxu0 %v94
    %96 = vmatprep.subr.mxu0 0.0
    %v97 = vand.u32 %v64, 4294901760
    %98 = vmatpush1.msra.mxu0 %v97
    %99 = vmatprep.subr.mxu0 0.0
    %v100 = vand.u32 %v65, 4294901760
    %101 = vmatpush1.msra.mxu0 %v100
    %102 = vmatprep.subr.mxu0 0.0
    %v103 = vand.u32 %v66, 4294901760
    %104 = vmatpush1.msra.mxu0 %v103
    %105 = vmatprep.subr.mxu0 0.0
    %v106 = vand.u32 %v67, 4294901760
    %107 = vmatpush1.msra.mxu0 %v106
    %108 = vmatprep.subr.mxu0 0.0
    %v109 = vand.u32 %v68, 4294901760
    %110 = vmatpush1.msra.mxu0 %v109
    %111 = vmatprep.subr.mxu0 0.0
    %v112 = vand.u32 %v69, 4294901760
    %113 = vmatpush1.msra.mxu0 %v112
    %114 = vmatprep.subr.mxu0 0.0
    %v115 = vand.u32 %v70, 4294901760
    %116 = vmatpush1.msra.mxu0 %v115
    %117 = vmatprep.subr.mxu0 0.0
    %v118 = vand.u32 %v71, 4294901760
    %119 = vmatpush1.msra.mxu0 %v118
    %120 = vmatprep.subr.mxu0 0.0
    %121 = vmatpush1.msra.mxu0 0.0
    %122 = vmatprep.subr.mxu0 0.0
    %123 = vmatpush1.msra.mxu0 0.0
    %124 = vmatprep.subr.mxu0 0.0
    %125 = vmatpush1.msra.mxu0 0.0
    %126 = vmatprep.subr.mxu0 0.0
    %127 = vmatpush1.msra.mxu0 0.0
    %128 = vmatprep.subr.mxu0 0.0
    %129 = vmatpush1.msra.mxu0 0.0
    %130 = vmatprep.subr.mxu0 0.0
    %131 = vmatpush1.msra.mxu0 0.0
    %132 = vmatprep.subr.mxu0 0.0
    %133 = vmatpush1.msra.mxu0 0.0
    %134 = vmatprep.subr.mxu0 0.0
    %135 = vmatpush1.msra.mxu0 0.0
    %136 = vmatprep.subr.mxu0 0.0
    %137 = vmatpush1.msra.mxu0 0.0
    %138 = vmatprep.subr.mxu0 0.0
    %139 = vmatpush1.msra.mxu0 0.0
    %140 = vmatprep.subr.mxu0 0.0
    %141 = vmatpush1.msra.mxu0 0.0
    %142 = vmatprep.subr.mxu0 0.0
    %143 = vmatpush1.msra.mxu0 0.0
    %144 = vmatprep.subr.mxu0 0.0
    %145 = vmatpush1.msra.mxu0 0.0
    %146 = vmatprep.subr.mxu0 0.0
    %147 = vmatpush1.msra.mxu0 0.0
    %148 = vmatprep.subr.mxu0 0.0
    %149 = vmatpush1.msra.mxu0 0.0
    %150 = vmatprep.subr.mxu0 0.0
    %151 = vmatpush1.msra.mxu0 0.0
    %152 = vmatprep.mubr.f32.mxu0 0.0
    %v153 = vand.u32 %v40, 4294901760
    %v154 = vsub.f32 %v40, %v153
    %v155 = vand.u32 %v154, 4294901760
    %v156 = vsub.f32 %v154, %v155
    %v157 = vand.u32 %v156, 4294901760
    %158 = vmatmul.mubr.f32.gmra.mrb[0].mxu0 %v157
    %v159 = vpop.f32.mrb[0].mxu0
    %v160 = vadd.f32 0.0, %v159
    %v161 = vpop.f32.mrb[0].mxu0
    %162 = vmatprep.mubr.f32.mxu0 0.0
    %v163 = vand.u32 %v41, 4294901760
    %v164 = vsub.f32 %v41, %v163
    %v165 = vand.u32 %v164, 4294901760
    %v166 = vsub.f32 %v164, %v165
    %v167 = vand.u32 %v166, 4294901760
    %168 = vmatmul.mubr.f32.gmra.mrb[0].mxu0 %v167
    %v169 = vpop.f32.mrb[0].mxu0
    %v170 = vadd.f32 0.0, %v169
    %v171 = vpop.f32.mrb[0].mxu0
    %172 = vmatprep.mubr.f32.mxu0 0.0
    %v173 = vand.u32 %v42, 4294901760
    %v174 = vsub.f32 %v42, %v173
    %v175 = vand.u32 %v174, 4294901760
    %v176 = vsub.f32 %v174, %v175
    %v177 = vand.u32 %v176, 4294901760
    %178 = vmatmul.mubr.f32.gmra.mrb[0].mxu0 %v177
    %v179 = vpop.f32.mrb[0].mxu0
    %v180 = vadd.f32 0.0, %v179
    %v181 = vpop.f32.mrb[0].mxu0
    %182 = vmatprep.mubr.f32.mxu0 0.0
    %v183 = vand.u32 %v43, 4294901760
    %v184 = vsub.f32 %v43, %v183
    %v185 = vand.u32 %v184, 4294901760
    %v186 = vsub.f32 %v184, %v185
    %v187 = vand.u32 %v186, 4294901760
    %188 = vmatmul.mubr.f32.gmra.mrb[0].mxu0 %v187
    %v189 = vpop.f32.mrb[0].mxu0
    %v190 = vadd.f32 0.0, %v189
    %v191 = vpop.f32.mrb[0].mxu0
    %192 = vmatprep.mubr.f32.mxu0 0.0
    %v193 = vand.u32 %v44, 4294901760
    %v194 = vsub.f32 %v44, %v193
    %v195 = vand.u32 %v194, 4294901760
    %v196 = vsub.f32 %v194, %v195
    %v197 = vand.u32 %v196, 4294901760
    %198 = vmatmul.mubr.f32.gmra.mrb[0].mxu0 %v197
    %v199 = vpop.f32.mrb[0].mxu0
    %v200 = vadd.f32 0.0, %v199
    %v201 = vpop.f32.mrb[0].mxu0
    %202 = vmatprep.mubr.f32.mxu0 0.0
    %v203 = vand.u32 %v45, 4294901760
    %v204 = vsub.f32 %v45, %v203
    %v205 = vand.u32 %v204, 4294901760
    %v206 = vsub.f32 %v204, %v205
    %v207 = vand.u32 %v206, 4294901760
    %208 = vmatmul.mubr.f32.gmra.mrb[0].mxu0 %v207
    %v209 = vpop.f32.mrb[0].mxu0
    %v210 = vadd.f32 0.0, %v209
    %v211 = vpop.f32.mrb[0].mxu0
    %212 = vmatprep.mubr.f32.mxu0 0.0
    %v213 = vand.u32 %v46, 4294901760
    %v214 = vsub.f32 %v46, %v213
    %v215 = vand.u32 %v214, 4294901760
    %v216 = vsub.f32 %v214, %v215
    %v217 = vand.u32 %v216, 4294901760
    %218 = vmatmul.mubr.f32.gmra.mrb[0].mxu0 %v217
    %v219 = vpop.f32.mrb[0].mxu0
    %v220 = vadd.f32 0.0, %v219
    %v221 = vpop.f32.mrb[0].mxu0
    %222 = vmatprep.mubr.f32.mxu0 0.0
    %v223 = vand.u32 %v47, 4294901760
    %v224 = vsub.f32 %v47, %v223
    %v225 = vand.u32 %v224, 4294901760
    %v226 = vsub.f32 %v224, %v225
    %v227 = vand.u32 %v226, 4294901760
    %228 = vmatmul.mubr.f32.gmra.mrb[0].mxu0 %v227
    %v229 = vpop.f32.mrb[0].mxu0
    %v230 = vadd.f32 0.0, %v229
    %v231 = vpop.f32.mrb[0].mxu0
    %232 = vmatprep.mubr.f32.mxu0 0.0
    %v233 = vand.u32 %v48, 4294901760
    %v234 = vsub.f32 %v48, %v233
    %v235 = vand.u32 %v234, 4294901760
    %v236 = vsub.f32 %v234, %v235
    %v237 = vand.u32 %v236, 4294901760
    %238 = vmatmul.mubr.f32.gmra.mrb[0].mxu0 %v237
    %v239 = vpop.f32.mrb[0].mxu0
    %v240 = vadd.f32 0.0, %v239
    %v241 = vpop.f32.mrb[0].mxu0
    %242 = vmatprep.mubr.f32.mxu0 0.0
    %v243 = vand.u32 %v49, 4294901760
    %v244 = vsub.f32 %v49, %v243
    %v245 = vand.u32 %v244, 4294901760
    %v246 = vsub.f32 %v244, %v245
    %v247 = vand.u32 %v246, 4294901760
    %248 = vmatmul.mubr.f32.gmra.mrb[0].mxu0 %v247
    %v249 = vpop.f32.mrb[0].mxu0
    %v250 = vadd.f32 0.0, %v249
    %v251 = vpop.f32.mrb[0].mxu0
    %252 = vmatprep.mubr.f32.mxu0 0.0
    %v253 = vand.u32 %v50, 4294901760
    %v254 = vsub.f32 %v50, %v253
    %v255 = vand.u32 %v254, 4294901760
    %v256 = vsub.f32 %v254, %v255
    %v257 = vand.u32 %v256, 4294901760
    %258 = vmatmul.mubr.f32.gmra.mrb[0].mxu0 %v257
    %v259 = vpop.f32.mrb[0].mxu0
    %v260 = vadd.f32 0.0, %v259
    %v261 = vpop.f32.mrb[0].mxu0
    %262 = vmatprep.mubr.f32.mxu0 0.0
    %v263 = vand.u32 %v51, 4294901760
    %v264 = vsub.f32 %v51, %v263
    %v265 = vand.u32 %v264, 4294901760
    %v266 = vsub.f32 %v264, %v265
    %v267 = vand.u32 %v266, 4294901760
    %268 = vmatmul.mubr.f32.gmra.mrb[0].mxu0 %v267
    %v269 = vpop.f32.mrb[0].mxu0
    %v270 = vadd.f32 0.0, %v269
    %v271 = vpop.f32.mrb[0].mxu0
    %272 = vmatprep.mubr.f32.mxu0 0.0
    %v273 = vand.u32 %v52, 4294901760
    %v274 = vsub.f32 %v52, %v273
    %v275 = vand.u32 %v274, 4294901760
    %v276 = vsub.f32 %v274, %v275
    %v277 = vand.u32 %v276, 4294901760
    %278 = vmatmul.mubr.f32.gmra.mrb[0].mxu0 %v277
    %v279 = vpop.f32.mrb[0].mxu0
    %v280 = vadd.f32 0.0, %v279
    %v281 = vpop.f32.mrb[0].mxu0
    %282 = vmatprep.mubr.f32.mxu0 0.0
    %v283 = vand.u32 %v53, 4294901760
    %v284 = vsub.f32 %v53, %v283
    %v285 = vand.u32 %v284, 4294901760
    %v286 = vsub.f32 %v284, %v285
    %v287 = vand.u32 %v286, 4294901760
    %288 = vmatmul.mubr.f32.gmra.mrb[0].mxu0 %v287
    %v289 = vpop.f32.mrb[0].mxu0
    %v290 = vadd.f32 0.0, %v289
    %v291 = vpop.f32.mrb[0].mxu0
    %292 = vmatprep.mubr.f32.mxu0 0.0
    %v293 = vand.u32 %v54, 4294901760
    %v294 = vsub.f32 %v54, %v293
    %v295 = vand.u32 %v294, 4294901760
    %v296 = vsub.f32 %v294, %v295
    %v297 = vand.u32 %v296, 4294901760
    %298 = vmatmul.mubr.f32.gmra.mrb[0].mxu0 %v297
    %v299 = vpop.f32.mrb[0].mxu0
    %v300 = vadd.f32 0.0, %v299
    %v301 = vpop.f32.mrb[0].mxu0
    %302 = vmatprep.mubr.f32.mxu0 0.0
    %v303 = vand.u32 %v55, 4294901760
    %v304 = vsub.f32 %v55, %v303
    %v305 = vand.u32 %v304, 4294901760
    %v306 = vsub.f32 %v304, %v305
    %v307 = vand.u32 %v306, 4294901760
    %308 = vmatmul.mubr.f32.gmra.mrb[0].mxu0 %v307
    %v309 = vpop.f32.mrb[0].mxu0
    %v310 = vadd.f32 0.0, %v309
    %v311 = vpop.f32.mrb[0].mxu0
    %312 = vdwg.mxu0
    %313 = vmatprep.subr.mxu0 0.0
    %v314 = vand.u32 %v56, 4294901760
    %v315 = vsub.f32 %v56, %v314
    %v316 = vand.u32 %v315, 4294901760
    %v317 = vsub.f32 %v315, %v316
    %v318 = vand.u32 %v317, 4294901760
    %319 = vmatpush1.msra.mxu0 %v318
    %320 = vmatprep.subr.mxu0 0.0
    %v321 = vand.u32 %v57, 4294901760
    %v322 = vsub.f32 %v57, %v321
    %v323 = vand.u32 %v322, 4294901760
    %v324 = vsub.f32 %v322, %v323
    %v325 = vand.u32 %v324, 4294901760
    %326 = vmatpush1.msra.mxu0 %v325
    %327 = vmatprep.subr.mxu0 0.0
    %v328 = vand.u32 %v58, 4294901760
    %v329 = vsub.f32 %v58, %v328
    %v330 = vand.u32 %v329, 4294901760
    %v331 = vsub.f32 %v329, %v330
    %v332 = vand.u32 %v331, 4294901760
    %333 = vmatpush1.msra.mxu0 %v332
    %334 = vmatprep.subr.mxu0 0.0
    %v335 = vand.u32 %v59, 4294901760
    %v336 = vsub.f32 %v59, %v335
    %v337 = vand.u32 %v336, 4294901760
    %v338 = vsub.f32 %v336, %v337
    %v339 = vand.u32 %v338, 4294901760
    %340 = vmatpush1.msra.mxu0 %v339
    %341 = vmatprep.subr.mxu0 0.0
    %v342 = vand.u32 %v60, 4294901760
    %v343 = vsub.f32 %v60, %v342
    %v344 = vand.u32 %v343, 4294901760
    %v345 = vsub.f32 %v343, %v344
    %v346 = vand.u32 %v345, 4294901760
    %347 = vmatpush1.msra.mxu0 %v346
    %348 = vmatprep.subr.mxu0 0.0
    %v349 = vand.u32 %v61, 4294901760
    %v350 = vsub.f32 %v61, %v349
    %v351 = vand.u32 %v350, 4294901760
    %v352 = vsub.f32 %v350, %v351
    %v353 = vand.u32 %v352, 4294901760
    %354 = vmatpush1.msra.mxu0 %v353
    %355 = vmatprep.subr.mxu0 0.0
    %v356 = vand.u32 %v62, 4294901760
    %v357 = vsub.f32 %v62, %v356
    %v358 = vand.u32 %v357, 4294901760
    %v359 = vsub.f32 %v357, %v358
    %v360 = vand.u32 %v359, 4294901760
    %361 = vmatpush1.msra.mxu0 %v360
    %362 = vmatprep.subr.mxu0 0.0
    %v363 = vand.u32 %v63, 4294901760
    %v364 = vsub.f32 %v63, %v363
    %v365 = vand.u32 %v364, 4294901760
    %v366 = vsub.f32 %v364, %v365
    %v367 = vand.u32 %v366, 4294901760
    %368 = vmatpush1.msra.mxu0 %v367
    %369 = vmatprep.subr.mxu0 0.0
    %v370 = vand.u32 %v64, 4294901760
    %v371 = vsub.f32 %v64, %v370
    %v372 = vand.u32 %v371, 4294901760
    %v373 = vsub.f32 %v371, %v372
    %v374 = vand.u32 %v373, 4294901760
    %375 = vmatpush1.msra.mxu0 %v374
    %376 = vmatprep.subr.mxu0 0.0
    %v377 = vand.u32 %v65, 4294901760
    %v378 = vsub.f32 %v65, %v377
    %v379 = vand.u32 %v378, 4294901760
    %v380 = vsub.f32 %v378, %v379
    %v381 = vand.u32 %v380, 4294901760
    %382 = vmatpush1.msra.mxu0 %v381
    %383 = vmatprep.subr.mxu0 0.0
    %v384 = vand.u32 %v66, 4294901760
    %v385 = vsub.f32 %v66, %v384
    %v386 = vand.u32 %v385, 4294901760
    %v387 = vsub.f32 %v385, %v386
    %v388 = vand.u32 %v387, 4294901760
    %389 = vmatpush1.msra.mxu0 %v388
    %390 = vmatprep.subr.mxu0 0.0
    %v391 = vand.u32 %v67, 4294901760
    %v392 = vsub.f32 %v67, %v391
    %v393 = vand.u32 %v392, 4294901760
    %v394 = vsub.f32 %v392, %v393
    %v395 = vand.u32 %v394, 4294901760
    %396 = vmatpush1.msra.mxu0 %v395
    %397 = vmatprep.subr.mxu0 0.0
    %v398 = vand.u32 %v68, 4294901760
    %v399 = vsub.f32 %v68, %v398
    %v400 = vand.u32 %v399, 4294901760
    %v401 = vsub.f32 %v399, %v400
    %v402 = vand.u32 %v401, 4294901760
    %403 = vmatpush1.msra.mxu0 %v402
    %404 = vmatprep.subr.mxu0 0.0
    %v405 = vand.u32 %v69, 4294901760
    %v406 = vsub.f32 %v69, %v405
    %v407 = vand.u32 %v406, 4294901760
    %v408 = vsub.f32 %v406, %v407
    %v409 = vand.u32 %v408, 4294901760
    %410 = vmatpush1.msra.mxu0 %v409
    %411 = vmatprep.subr.mxu0 0.0
    %v412 = vand.u32 %v70, 4294901760
    %v413 = vsub.f32 %v70, %v412
    %v414 = vand.u32 %v413, 4294901760
    %v415 = vsub.f32 %v413, %v414
    %v416 = vand.u32 %v415, 4294901760
    %417 = vmatpush1.msra.mxu0 %v416
    %418 = vmatprep.subr.mxu0 0.0
    %v419 = vand.u32 %v71, 4294901760
    %v420 = vsub.f32 %v71, %v419
    %v421 = vand.u32 %v420, 4294901760
    %v422 = vsub.f32 %v420, %v421
    %v423 = vand.u32 %v422, 4294901760
    %424 = vmatpush1.msra.mxu0 %v423
    %425 = vmatprep.subr.mxu0 0.0
    %426 = vmatpush1.msra.mxu0 0.0
    %427 = vmatprep.subr.mxu0 0.0
    %428 = vmatpush1.msra.mxu0 0.0
    %429 = vmatprep.subr.mxu0 0.0
    %430 = vmatpush1.msra.mxu0 0.0
    %431 = vmatprep.subr.mxu0 0.0
    %432 = vmatpush1.msra.mxu0 0.0
    %433 = vmatprep.subr.mxu0 0.0
    %434 = vmatpush1.msra.mxu0 0.0
    %435 = vmatprep.subr.mxu0 0.0
    %436 = vmatpush1.msra.mxu0 0.0
    %437 = vmatprep.subr.mxu0 0.0
    %438 = vmatpush1.msra.mxu0 0.0
    %439 = vmatprep.subr.mxu0 0.0
    %440 = vmatpush1.msra.mxu0 0.0
    %441 = vmatprep.subr.mxu0 0.0
    %442 = vmatpush1.msra.mxu0 0.0
    %443 = vmatprep.subr.mxu0 0.0
    %444 = vmatpush1.msra.mxu0 0.0
    %445 = vmatprep.subr.mxu0 0.0
    %446 = vmatpush1.msra.mxu0 0.0
    %447 = vmatprep.subr.mxu0 0.0
    %448 = vmatpush1.msra.mxu0 0.0
    %449 = vmatprep.subr.mxu0 0.0
    %450 = vmatpush1.msra.mxu0 0.0
    %451 = vmatprep.subr.mxu0 0.0
    %452 = vmatpush1.msra.mxu0 0.0
    %453 = vmatprep.subr.mxu0 0.0
    %454 = vmatpush1.msra.mxu0 0.0
    %455 = vmatprep.subr.mxu0 0.0
    %456 = vmatpush1.msra.mxu0 0.0
    %457 = vmatprep.mubr.f32.mxu0 0.0
    %v458 = vand.u32 %v40, 4294901760
    %459 = vmatmul.mubr.f32.gmra.mrb[0].mxu0 %v458
    %v460 = vpop.f32.mrb[0].mxu0
    %v461 = vadd.f32 %v160, %v460
    %v462 = vpop.f32.mrb[0].mxu0
    %463 = vmatprep.mubr.f32.mxu0 0.0
    %v464 = vand.u32 %v41, 4294901760
    %465 = vmatmul.mubr.f32.gmra.mrb[0].mxu0 %v464
    %v466 = vpop.f32.mrb[0].mxu0
    %v467 = vadd.f32 %v170, %v466
    %v468 = vpop.f32.mrb[0].mxu0
    %469 = vmatprep.mubr.f32.mxu0 0.0
    %v470 = vand.u32 %v42, 4294901760
    %471 = vmatmul.mubr.f32.gmra.mrb[0].mxu0 %v470
    %v472 = vpop.f32.mrb[0].mxu0
    %v473 = vadd.f32 %v180, %v472
    %v474 = vpop.f32.mrb[0].mxu0
    %475 = vmatprep.mubr.f32.mxu0 0.0
    %v476 = vand.u32 %v43, 4294901760
    %477 = vmatmul.mubr.f32.gmra.mrb[0].mxu0 %v476
    %v478 = vpop.f32.mrb[0].mxu0
    %v479 = vadd.f32 %v190, %v478
    %v480 = vpop.f32.mrb[0].mxu0
    %481 = vmatprep.mubr.f32.mxu0 0.0
    %v482 = vand.u32 %v44, 4294901760
    %483 = vmatmul.mubr.f32.gmra.mrb[0].mxu0 %v482
    %v484 = vpop.f32.mrb[0].mxu0
    %v485 = vadd.f32 %v200, %v484
    %v486 = vpop.f32.mrb[0].mxu0
    %487 = vmatprep.mubr.f32.mxu0 0.0
    %v488 = vand.u32 %v45, 4294901760
    %489 = vmatmul.mubr.f32.gmra.mrb[0].mxu0 %v488
    %v490 = vpop.f32.mrb[0].mxu0
    %v491 = vadd.f32 %v210, %v490
    %v492 = vpop.f32.mrb[0].mxu0
    %493 = vmatprep.mubr.f32.mxu0 0.0
    %v494 = vand.u32 %v46, 4294901760
    %495 = vmatmul.mubr.f32.gmra.mrb[0].mxu0 %v494
    %v496 = vpop.f32.mrb[0].mxu0
    %v497 = vadd.f32 %v220, %v496
    %v498 = vpop.f32.mrb[0].mxu0
    %499 = vmatprep.mubr.f32.mxu0 0.0
    %v500 = vand.u32 %v47, 4294901760
    %501 = vmatmul.mubr.f32.gmra.mrb[0].mxu0 %v500
    %v502 = vpop.f32.mrb[0].mxu0
    %v503 = vadd.f32 %v230, %v502
    %v504 = vpop.f32.mrb[0].mxu0
    %505 = vmatprep.mubr.f32.mxu0 0.0
    %v506 = vand.u32 %v48, 4294901760
    %507 = vmatmul.mubr.f32.gmra.mrb[0].mxu0 %v506
    %v508 = vpop.f32.mrb[0].mxu0
    %v509 = vadd.f32 %v240, %v508
    %v510 = vpop.f32.mrb[0].mxu0
    %511 = vmatprep.mubr.f32.mxu0 0.0
    %v512 = vand.u32 %v49, 4294901760
    %513 = vmatmul.mubr.f32.gmra.mrb[0].mxu0 %v512
    %v514 = vpop.f32.mrb[0].mxu0
    %v515 = vadd.f32 %v250, %v514
    %v516 = vpop.f32.mrb[0].mxu0
    %517 = vmatprep.mubr.f32.mxu0 0.0
    %v518 = vand.u32 %v50, 4294901760
    %519 = vmatmul.mubr.f32.gmra.mrb[0].mxu0 %v518
    %v520 = vpop.f32.mrb[0].mxu0
    %v521 = vadd.f32 %v260, %v520
    %v522 = vpop.f32.mrb[0].mxu0
    %523 = vmatprep.mubr.f32.mxu0 0.0
    %v524 = vand.u32 %v51, 4294901760
    %525 = vmatmul.mubr.f32.gmra.mrb[0].mxu0 %v524
    %v526 = vpop.f32.mrb[0].mxu0
    %v527 = vadd.f32 %v270, %v526
    %v528 = vpop.f32.mrb[0].mxu0
    %529 = vmatprep.mubr.f32.mxu0 0.0
    %v530 = vand.u32 %v52, 4294901760
    %531 = vmatmul.mubr.f32.gmra.mrb[0].mxu0 %v530
    %v532 = vpop.f32.mrb[0].mxu0
    %v533 = vadd.f32 %v280, %v532
    %v534 = vpop.f32.mrb[0].mxu0
    %535 = vmatprep.mubr.f32.mxu0 0.0
    %v536 = vand.u32 %v53, 4294901760
    %537 = vmatmul.mubr.f32.gmra.mrb[0].mxu0 %v536
    %v538 = vpop.f32.mrb[0].mxu0
    %v539 = vadd.f32 %v290, %v538
    %v540 = vpop.f32.mrb[0].mxu0
    %541 = vmatprep.mubr.f32.mxu0 0.0
    %v542 = vand.u32 %v54, 4294901760
    %543 = vmatmul.mubr.f32.gmra.mrb[0].mxu0 %v542
    %v544 = vpop.f32.mrb[0].mxu0
    %v545 = vadd.f32 %v300, %v544
    %v546 = vpop.f32.mrb[0].mxu0
    %547 = vmatprep.mubr.f32.mxu0 0.0
    %v548 = vand.u32 %v55, 4294901760
    %549 = vmatmul.mubr.f32.gmra.mrb[0].mxu0 %v548
    %v550 = vpop.f32.mrb[0].mxu0
    %v551 = vadd.f32 %v310, %v550
    %v552 = vpop.f32.mrb[0].mxu0
    %553 = vdwg.mxu0
    %554 = vmatprep.subr.mxu0 0.0
    %v555 = vand.u32 %v56, 4294901760
    %v556 = vsub.f32 %v56, %v555
    %557 = vmatpush1.msra.mxu0 %v556
    %558 = vmatprep.subr.mxu0 0.0
    %v559 = vand.u32 %v57, 4294901760
    %v560 = vsub.f32 %v57, %v559
    %561 = vmatpush1.msra.mxu0 %v560
    %562 = vmatprep.subr.mxu0 0.0
    %v563 = vand.u32 %v58, 4294901760
    %v564 = vsub.f32 %v58, %v563
    %565 = vmatpush1.msra.mxu0 %v564
    %566 = vmatprep.subr.mxu0 0.0
    %v567 = vand.u32 %v59, 4294901760
    %v568 = vsub.f32 %v59, %v567
    %569 = vmatpush1.msra.mxu0 %v568
    %570 = vmatprep.subr.mxu0 0.0
    %v571 = vand.u32 %v60, 4294901760
    %v572 = vsub.f32 %v60, %v571
    %573 = vmatpush1.msra.mxu0 %v572
    %574 = vmatprep.subr.mxu0 0.0
    %v575 = vand.u32 %v61, 4294901760
    %v576 = vsub.f32 %v61, %v575
    %577 = vmatpush1.msra.mxu0 %v576
    %578 = vmatprep.subr.mxu0 0.0
    %v579 = vand.u32 %v62, 4294901760
    %v580 = vsub.f32 %v62, %v579
    %581 = vmatpush1.msra.mxu0 %v580
    %582 = vmatprep.subr.mxu0 0.0
    %v583 = vand.u32 %v63, 4294901760
    %v584 = vsub.f32 %v63, %v583
    %585 = vmatpush1.msra.mxu0 %v584
    %586 = vmatprep.subr.mxu0 0.0
    %v587 = vand.u32 %v64, 4294901760
    %v588 = vsub.f32 %v64, %v587
    %589 = vmatpush1.msra.mxu0 %v588
    %590 = vmatprep.subr.mxu0 0.0
    %v591 = vand.u32 %v65, 4294901760
    %v592 = vsub.f32 %v65, %v591
    %593 = vmatpush1.msra.mxu0 %v592
    %594 = vmatprep.subr.mxu0 0.0
    %v595 = vand.u32 %v66, 4294901760
    %v596 = vsub.f32 %v66, %v595
    %597 = vmatpush1.msra.mxu0 %v596
    %598 = vmatprep.subr.mxu0 0.0
    %v599 = vand.u32 %v67, 4294901760
    %v600 = vsub.f32 %v67, %v599
    %601 = vmatpush1.msra.mxu0 %v600
    %602 = vmatprep.subr.mxu0 0.0
    %v603 = vand.u32 %v68, 4294901760
    %v604 = vsub.f32 %v68, %v603
    %605 = vmatpush1.msra.mxu0 %v604
    %606 = vmatprep.subr.mxu0 0.0
    %v607 = vand.u32 %v69, 4294901760
    %v608 = vsub.f32 %v69, %v607
    %609 = vmatpush1.msra.mxu0 %v608
    %610 = vmatprep.subr.mxu0 0.0
    %v611 = vand.u32 %v70, 4294901760
    %v612 = vsub.f32 %v70, %v611
    %613 = vmatpush1.msra.mxu0 %v612
    %614 = vmatprep.subr.mxu0 0.0
    %v615 = vand.u32 %v71, 4294901760
    %v616 = vsub.f32 %v71, %v615
    %617 = vmatpush1.msra.mxu0 %v616
    %618 = vmatprep.subr.mxu0 0.0
    %619 = vmatpush1.msra.mxu0 0.0
    %620 = vmatprep.subr.mxu0 0.0
    %621 = vmatpush1.msra.mxu0 0.0
    %622 = vmatprep.subr.mxu0 0.0
    %623 = vmatpush1.msra.mxu0 0.0
    %624 = vmatprep.subr.mxu0 0.0
    %625 = vmatpush1.msra.mxu0 0.0
    %626 = vmatprep.subr.mxu0 0.0
    %627 = vmatpush1.msra.mxu0 0.0
    %628 = vmatprep.subr.mxu0 0.0
    %629 = vmatpush1.msra.mxu0 0.0
    %630 = vmatprep.subr.mxu0 0.0
    %631 = vmatpush1.msra.mxu0 0.0
    %632 = vmatprep.subr.mxu0 0.0
    %633 = vmatpush1.msra.mxu0 0.0
    %634 = vmatprep.subr.mxu0 0.0
    %635 = vmatpush1.msra.mxu0 0.0
    %636 = vmatprep.subr.mxu0 0.0
    %637 = vmatpush1.msra.mxu0 0.0
    %638 = vmatprep.subr.mxu0 0.0
    %639 = vmatpush1.msra.mxu0 0.0
    %640 = vmatprep.subr.mxu0 0.0
    %641 = vmatpush1.msra.mxu0 0.0
    %642 = vmatprep.subr.mxu0 0.0
    %643 = vmatpush1.msra.mxu0 0.0
    %644 = vmatprep.subr.mxu0 0.0
    %645 = vmatpush1.msra.mxu0 0.0
    %646 = vmatprep.subr.mxu0 0.0
    %647 = vmatpush1.msra.mxu0 0.0
    %648 = vmatprep.subr.mxu0 0.0
    %649 = vmatpush1.msra.mxu0 0.0
    %650 = vmatprep.mubr.f32.mxu0 0.0
    %v651 = vand.u32 %v40, 4294901760
    %v652 = vsub.f32 %v40, %v651
    %653 = vmatmul.mubr.f32.gmra.mrb[0].mxu0 %v652
    %v654 = vpop.f32.mrb[0].mxu0
    %v655 = vadd.f32 %v461, %v654
    %v656 = vpop.f32.mrb[0].mxu0
    %657 = vmatprep.mubr.f32.mxu0 0.0
    %v658 = vand.u32 %v41, 4294901760
    %v659 = vsub.f32 %v41, %v658
    %660 = vmatmul.mubr.f32.gmra.mrb[0].mxu0 %v659
    %v661 = vpop.f32.mrb[0].mxu0
    %v662 = vadd.f32 %v467, %v661
    %v663 = vpop.f32.mrb[0].mxu0
    %664 = vmatprep.mubr.f32.mxu0 0.0
    %v665 = vand.u32 %v42, 4294901760
    %v666 = vsub.f32 %v42, %v665
    %667 = vmatmul.mubr.f32.gmra.mrb[0].mxu0 %v666
    %v668 = vpop.f32.mrb[0].mxu0
    %v669 = vadd.f32 %v473, %v668
    %v670 = vpop.f32.mrb[0].mxu0
    %671 = vmatprep.mubr.f32.mxu0 0.0
    %v672 = vand.u32 %v43, 4294901760
    %v673 = vsub.f32 %v43, %v672
    %674 = vmatmul.mubr.f32.gmra.mrb[0].mxu0 %v673
    %v675 = vpop.f32.mrb[0].mxu0
    %v676 = vadd.f32 %v479, %v675
    %v677 = vpop.f32.mrb[0].mxu0
    %678 = vmatprep.mubr.f32.mxu0 0.0
    %v679 = vand.u32 %v44, 4294901760
    %v680 = vsub.f32 %v44, %v679
    %681 = vmatmul.mubr.f32.gmra.mrb[0].mxu0 %v680
    %v682 = vpop.f32.mrb[0].mxu0
    %v683 = vadd.f32 %v485, %v682
    %v684 = vpop.f32.mrb[0].mxu0
    %685 = vmatprep.mubr.f32.mxu0 0.0
    %v686 = vand.u32 %v45, 4294901760
    %v687 = vsub.f32 %v45, %v686
    %688 = vmatmul.mubr.f32.gmra.mrb[0].mxu0 %v687
    %v689 = vpop.f32.mrb[0].mxu0
    %v690 = vadd.f32 %v491, %v689
    %v691 = vpop.f32.mrb[0].mxu0
    %692 = vmatprep.mubr.f32.mxu0 0.0
    %v693 = vand.u32 %v46, 4294901760
    %v694 = vsub.f32 %v46, %v693
    %695 = vmatmul.mubr.f32.gmra.mrb[0].mxu0 %v694
    %v696 = vpop.f32.mrb[0].mxu0
    %v697 = vadd.f32 %v497, %v696
    %v698 = vpop.f32.mrb[0].mxu0
    %699 = vmatprep.mubr.f32.mxu0 0.0
    %v700 = vand.u32 %v47, 4294901760
    %v701 = vsub.f32 %v47, %v700
    %702 = vmatmul.mubr.f32.gmra.mrb[0].mxu0 %v701
    %v703 = vpop.f32.mrb[0].mxu0
    %v704 = vadd.f32 %v503, %v703
    %v705 = vpop.f32.mrb[0].mxu0
    %706 = vmatprep.mubr.f32.mxu0 0.0
    %v707 = vand.u32 %v48, 4294901760
    %v708 = vsub.f32 %v48, %v707
    %709 = vmatmul.mubr.f32.gmra.mrb[0].mxu0 %v708
    %v710 = vpop.f32.mrb[0].mxu0
    %v711 = vadd.f32 %v509, %v710
    %v712 = vpop.f32.mrb[0].mxu0
    %713 = vmatprep.mubr.f32.mxu0 0.0
    %v714 = vand.u32 %v49, 4294901760
    %v715 = vsub.f32 %v49, %v714
    %716 = vmatmul.mubr.f32.gmra.mrb[0].mxu0 %v715
    %v717 = vpop.f32.mrb[0].mxu0
    %v718 = vadd.f32 %v515, %v717
    %v719 = vpop.f32.mrb[0].mxu0
    %720 = vmatprep.mubr.f32.mxu0 0.0
    %v721 = vand.u32 %v50, 4294901760
    %v722 = vsub.f32 %v50, %v721
    %723 = vmatmul.mubr.f32.gmra.mrb[0].mxu0 %v722
    %v724 = vpop.f32.mrb[0].mxu0
    %v725 = vadd.f32 %v521, %v724
    %v726 = vpop.f32.mrb[0].mxu0
    %727 = vmatprep.mubr.f32.mxu0 0.0
    %v728 = vand.u32 %v51, 4294901760
    %v729 = vsub.f32 %v51, %v728
    %730 = vmatmul.mubr.f32.gmra.mrb[0].mxu0 %v729
    %v731 = vpop.f32.mrb[0].mxu0
    %v732 = vadd.f32 %v527, %v731
    %v733 = vpop.f32.mrb[0].mxu0
    %734 = vmatprep.mubr.f32.mxu0 0.0
    %v735 = vand.u32 %v52, 4294901760
    %v736 = vsub.f32 %v52, %v735
    %737 = vmatmul.mubr.f32.gmra.mrb[0].mxu0 %v736
    %v738 = vpop.f32.mrb[0].mxu0
    %v739 = vadd.f32 %v533, %v738
    %v740 = vpop.f32.mrb[0].mxu0
    %741 = vmatprep.mubr.f32.mxu0 0.0
    %v742 = vand.u32 %v53, 4294901760
    %v743 = vsub.f32 %v53, %v742
    %744 = vmatmul.mubr.f32.gmra.mrb[0].mxu0 %v743
    %v745 = vpop.f32.mrb[0].mxu0
    %v746 = vadd.f32 %v539, %v745
    %v747 = vpop.f32.mrb[0].mxu0
    %748 = vmatprep.mubr.f32.mxu0 0.0
    %v749 = vand.u32 %v54, 4294901760
    %v750 = vsub.f32 %v54, %v749
    %751 = vmatmul.mubr.f32.gmra.mrb[0].mxu0 %v750
    %v752 = vpop.f32.mrb[0].mxu0
    %v753 = vadd.f32 %v545, %v752
    %v754 = vpop.f32.mrb[0].mxu0
    %755 = vmatprep.mubr.f32.mxu0 0.0
    %v756 = vand.u32 %v55, 4294901760
    %v757 = vsub.f32 %v55, %v756
    %758 = vmatmul.mubr.f32.gmra.mrb[0].mxu0 %v757
    %v759 = vpop.f32.mrb[0].mxu0
    %v760 = vadd.f32 %v551, %v759
    %v761 = vpop.f32.mrb[0].mxu0
    %762 = vdwg.mxu0
    %763 = vmatprep.subr.mxu0 0.0
    %v764 = vand.u32 %v56, 4294901760
    %765 = vmatpush1.msra.mxu0 %v764
    %766 = vmatprep.subr.mxu0 0.0
    %v767 = vand.u32 %v57, 4294901760
    %768 = vmatpush1.msra.mxu0 %v767
    %769 = vmatprep.subr.mxu0 0.0
    %v770 = vand.u32 %v58, 4294901760
    %771 = vmatpush1.msra.mxu0 %v770
    %772 = vmatprep.subr.mxu0 0.0
    %v773 = vand.u32 %v59, 4294901760
    %774 = vmatpush1.msra.mxu0 %v773
    %775 = vmatprep.subr.mxu0 0.0
    %v776 = vand.u32 %v60, 4294901760
    %777 = vmatpush1.msra.mxu0 %v776
    %778 = vmatprep.subr.mxu0 0.0
    %v779 = vand.u32 %v61, 4294901760
    %780 = vmatpush1.msra.mxu0 %v779
    %781 = vmatprep.subr.mxu0 0.0
    %v782 = vand.u32 %v62, 4294901760
    %783 = vmatpush1.msra.mxu0 %v782
    %784 = vmatprep.subr.mxu0 0.0
    %v785 = vand.u32 %v63, 4294901760
    %786 = vmatpush1.msra.mxu0 %v785
    %787 = vmatprep.subr.mxu0 0.0
    %v788 = vand.u32 %v64, 4294901760
    %789 = vmatpush1.msra.mxu0 %v788
    %790 = vmatprep.subr.mxu0 0.0
    %v791 = vand.u32 %v65, 4294901760
    %792 = vmatpush1.msra.mxu0 %v791
    %793 = vmatprep.subr.mxu0 0.0
    %v794 = vand.u32 %v66, 4294901760
    %795 = vmatpush1.msra.mxu0 %v794
    %796 = vmatprep.subr.mxu0 0.0
    %v797 = vand.u32 %v67, 4294901760
    %798 = vmatpush1.msra.mxu0 %v797
    %799 = vmatprep.subr.mxu0 0.0
    %v800 = vand.u32 %v68, 4294901760
    %801 = vmatpush1.msra.mxu0 %v800
    %802 = vmatprep.subr.mxu0 0.0
    %v803 = vand.u32 %v69, 4294901760
    %804 = vmatpush1.msra.mxu0 %v803
    %805 = vmatprep.subr.mxu0 0.0
    %v806 = vand.u32 %v70, 4294901760
    %807 = vmatpush1.msra.mxu0 %v806
    %808 = vmatprep.subr.mxu0 0.0
    %v809 = vand.u32 %v71, 4294901760
    %810 = vmatpush1.msra.mxu0 %v809
    %811 = vmatprep.subr.mxu0 0.0
    %812 = vmatpush1.msra.mxu0 0.0
    %813 = vmatprep.subr.mxu0 0.0
    %814 = vmatpush1.msra.mxu0 0.0
    %815 = vmatprep.subr.mxu0 0.0
    %816 = vmatpush1.msra.mxu0 0.0
    %817 = vmatprep.subr.mxu0 0.0
    %818 = vmatpush1.msra.mxu0 0.0
    %819 = vmatprep.subr.mxu0 0.0
    %820 = vmatpush1.msra.mxu0 0.0
    %821 = vmatprep.subr.mxu0 0.0
    %822 = vmatpush1.msra.mxu0 0.0
    %823 = vmatprep.subr.mxu0 0.0
    %824 = vmatpush1.msra.mxu0 0.0
    %825 = vmatprep.subr.mxu0 0.0
    %826 = vmatpush1.msra.mxu0 0.0
    %827 = vmatprep.subr.mxu0 0.0
    %828 = vmatpush1.msra.mxu0 0.0
    %829 = vmatprep.subr.mxu0 0.0
    %830 = vmatpush1.msra.mxu0 0.0
    %831 = vmatprep.subr.mxu0 0.0
    %832 = vmatpush1.msra.mxu0 0.0
    %833 = vmatprep.subr.mxu0 0.0
    %834 = vmatpush1.msra.mxu0 0.0
    %835 = vmatprep.subr.mxu0 0.0
    %836 = vmatpush1.msra.mxu0 0.0
    %837 = vmatprep.subr.mxu0 0.0
    %838 = vmatpush1.msra.mxu0 0.0
    %839 = vmatprep.subr.mxu0 0.0
    %840 = vmatpush1.msra.mxu0 0.0
    %841 = vmatprep.subr.mxu0 0.0
    %842 = vmatpush1.msra.mxu0 0.0
    %843 = vmatprep.mubr.f32.mxu0 0.0
    %v844 = vand.u32 %v40, 4294901760
    %v845 = vsub.f32 %v40, %v844
    %v846 = vand.u32 %v845, 4294901760
    %847 = vmatmul.mubr.f32.gmra.mrb[0].mxu0 %v846
    %v848 = vpop.f32.mrb[0].mxu0
    %v849 = vadd.f32 %v655, %v848
    %v850 = vpop.f32.mrb[0].mxu0
    %851 = vmatprep.mubr.f32.mxu0 0.0
    %v852 = vand.u32 %v41, 4294901760
    %v853 = vsub.f32 %v41, %v852
    %v854 = vand.u32 %v853, 4294901760
    %855 = vmatmul.mubr.f32.gmra.mrb[0].mxu0 %v854
    %v856 = vpop.f32.mrb[0].mxu0
    %v857 = vadd.f32 %v662, %v856
    %v858 = vpop.f32.mrb[0].mxu0
    %859 = vmatprep.mubr.f32.mxu0 0.0
    %v860 = vand.u32 %v42, 4294901760
    %v861 = vsub.f32 %v42, %v860
    %v862 = vand.u32 %v861, 4294901760
    %863 = vmatmul.mubr.f32.gmra.mrb[0].mxu0 %v862
    %v864 = vpop.f32.mrb[0].mxu0
    %v865 = vadd.f32 %v669, %v864
    %v866 = vpop.f32.mrb[0].mxu0
    %867 = vmatprep.mubr.f32.mxu0 0.0
    %v868 = vand.u32 %v43, 4294901760
    %v869 = vsub.f32 %v43, %v868
    %v870 = vand.u32 %v869, 4294901760
    %871 = vmatmul.mubr.f32.gmra.mrb[0].mxu0 %v870
    %v872 = vpop.f32.mrb[0].mxu0
    %v873 = vadd.f32 %v676, %v872
    %v874 = vpop.f32.mrb[0].mxu0
    %875 = vmatprep.mubr.f32.mxu0 0.0
    %v876 = vand.u32 %v44, 4294901760
    %v877 = vsub.f32 %v44, %v876
    %v878 = vand.u32 %v877, 4294901760
    %879 = vmatmul.mubr.f32.gmra.mrb[0].mxu0 %v878
    %v880 = vpop.f32.mrb[0].mxu0
    %v881 = vadd.f32 %v683, %v880
    %v882 = vpop.f32.mrb[0].mxu0
    %883 = vmatprep.mubr.f32.mxu0 0.0
    %v884 = vand.u32 %v45, 4294901760
    %v885 = vsub.f32 %v45, %v884
    %v886 = vand.u32 %v885, 4294901760
    %887 = vmatmul.mubr.f32.gmra.mrb[0].mxu0 %v886
    %v888 = vpop.f32.mrb[0].mxu0
    %v889 = vadd.f32 %v690, %v888
    %v890 = vpop.f32.mrb[0].mxu0
    %891 = vmatprep.mubr.f32.mxu0 0.0
    %v892 = vand.u32 %v46, 4294901760
    %v893 = vsub.f32 %v46, %v892
    %v894 = vand.u32 %v893, 4294901760
    %895 = vmatmul.mubr.f32.gmra.mrb[0].mxu0 %v894
    %v896 = vpop.f32.mrb[0].mxu0
    %v897 = vadd.f32 %v697, %v896
    %v898 = vpop.f32.mrb[0].mxu0
    %899 = vmatprep.mubr.f32.mxu0 0.0
    %v900 = vand.u32 %v47, 4294901760
    %v901 = vsub.f32 %v47, %v900
    %v902 = vand.u32 %v901, 4294901760
    %903 = vmatmul.mubr.f32.gmra.mrb[0].mxu0 %v902
    %v904 = vpop.f32.mrb[0].mxu0
    %v905 = vadd.f32 %v704, %v904
    %v906 = vpop.f32.mrb[0].mxu0
    %907 = vmatprep.mubr.f32.mxu0 0.0
    %v908 = vand.u32 %v48, 4294901760
    %v909 = vsub.f32 %v48, %v908
    %v910 = vand.u32 %v909, 4294901760
    %911 = vmatmul.mubr.f32.gmra.mrb[0].mxu0 %v910
    %v912 = vpop.f32.mrb[0].mxu0
    %v913 = vadd.f32 %v711, %v912
    %v914 = vpop.f32.mrb[0].mxu0
    %915 = vmatprep.mubr.f32.mxu0 0.0
    %v916 = vand.u32 %v49, 4294901760
    %v917 = vsub.f32 %v49, %v916
    %v918 = vand.u32 %v917, 4294901760
    %919 = vmatmul.mubr.f32.gmra.mrb[0].mxu0 %v918
    %v920 = vpop.f32.mrb[0].mxu0
    %v921 = vadd.f32 %v718, %v920
    %v922 = vpop.f32.mrb[0].mxu0
    %923 = vmatprep.mubr.f32.mxu0 0.0
    %v924 = vand.u32 %v50, 4294901760
    %v925 = vsub.f32 %v50, %v924
    %v926 = vand.u32 %v925, 4294901760
    %927 = vmatmul.mubr.f32.gmra.mrb[0].mxu0 %v926
    %v928 = vpop.f32.mrb[0].mxu0
    %v929 = vadd.f32 %v725, %v928
    %v930 = vpop.f32.mrb[0].mxu0
    %931 = vmatprep.mubr.f32.mxu0 0.0
    %v932 = vand.u32 %v51, 4294901760
    %v933 = vsub.f32 %v51, %v932
    %v934 = vand.u32 %v933, 4294901760
    %935 = vmatmul.mubr.f32.gmra.mrb[0].mxu0 %v934
    %v936 = vpop.f32.mrb[0].mxu0
    %v937 = vadd.f32 %v732, %v936
    %v938 = vpop.f32.mrb[0].mxu0
    %939 = vmatprep.mubr.f32.mxu0 0.0
    %v940 = vand.u32 %v52, 4294901760
    %v941 = vsub.f32 %v52, %v940
    %v942 = vand.u32 %v941, 4294901760
    %943 = vmatmul.mubr.f32.gmra.mrb[0].mxu0 %v942
    %v944 = vpop.f32.mrb[0].mxu0
    %v945 = vadd.f32 %v739, %v944
    %v946 = vpop.f32.mrb[0].mxu0
    %947 = vmatprep.mubr.f32.mxu0 0.0
    %v948 = vand.u32 %v53, 4294901760
    %v949 = vsub.f32 %v53, %v948
    %v950 = vand.u32 %v949, 4294901760
    %951 = vmatmul.mubr.f32.gmra.mrb[0].mxu0 %v950
    %v952 = vpop.f32.mrb[0].mxu0
    %v953 = vadd.f32 %v746, %v952
    %v954 = vpop.f32.mrb[0].mxu0
    %955 = vmatprep.mubr.f32.mxu0 0.0
    %v956 = vand.u32 %v54, 4294901760
    %v957 = vsub.f32 %v54, %v956
    %v958 = vand.u32 %v957, 4294901760
    %959 = vmatmul.mubr.f32.gmra.mrb[0].mxu0 %v958
    %v960 = vpop.f32.mrb[0].mxu0
    %v961 = vadd.f32 %v753, %v960
    %v962 = vpop.f32.mrb[0].mxu0
    %963 = vmatprep.mubr.f32.mxu0 0.0
    %v964 = vand.u32 %v55, 4294901760
    %v965 = vsub.f32 %v55, %v964
    %v966 = vand.u32 %v965, 4294901760
    %967 = vmatmul.mubr.f32.gmra.mrb[0].mxu0 %v966
    %v968 = vpop.f32.mrb[0].mxu0
    %v969 = vadd.f32 %v760, %v968
    %v970 = vpop.f32.mrb[0].mxu0
    %971 = vdwg.mxu0
    %972 = vmatprep.subr.mxu0 0.0
    %v973 = vand.u32 %v56, 4294901760
    %v974 = vsub.f32 %v56, %v973
    %v975 = vand.u32 %v974, 4294901760
    %976 = vmatpush1.msra.mxu0 %v975
    %977 = vmatprep.subr.mxu0 0.0
    %v978 = vand.u32 %v57, 4294901760
    %v979 = vsub.f32 %v57, %v978
    %v980 = vand.u32 %v979, 4294901760
    %981 = vmatpush1.msra.mxu0 %v980
    %982 = vmatprep.subr.mxu0 0.0
    %v983 = vand.u32 %v58, 4294901760
    %v984 = vsub.f32 %v58, %v983
    %v985 = vand.u32 %v984, 4294901760
    %986 = vmatpush1.msra.mxu0 %v985
    %987 = vmatprep.subr.mxu0 0.0
    %v988 = vand.u32 %v59, 4294901760
    %v989 = vsub.f32 %v59, %v988
    %v990 = vand.u32 %v989, 4294901760
    %991 = vmatpush1.msra.mxu0 %v990
    %992 = vmatprep.subr.mxu0 0.0
    %v993 = vand.u32 %v60, 4294901760
    %v994 = vsub.f32 %v60, %v993
    %v995 = vand.u32 %v994, 4294901760
    %996 = vmatpush1.msra.mxu0 %v995
    %997 = vmatprep.subr.mxu0 0.0
    %v998 = vand.u32 %v61, 4294901760
    %v999 = vsub.f32 %v61, %v998
    %v1000 = vand.u32 %v999, 4294901760
    %1001 = vmatpush1.msra.mxu0 %v1000
    %1002 = vmatprep.subr.mxu0 0.0
    %v1003 = vand.u32 %v62, 4294901760
    %v1004 = vsub.f32 %v62, %v1003
    %v1005 = vand.u32 %v1004, 4294901760
    %1006 = vmatpush1.msra.mxu0 %v1005
    %1007 = vmatprep.subr.mxu0 0.0
    %v1008 = vand.u32 %v63, 4294901760
    %v1009 = vsub.f32 %v63, %v1008
    %v1010 = vand.u32 %v1009, 4294901760
    %1011 = vmatpush1.msra.mxu0 %v1010
    %1012 = vmatprep.subr.mxu0 0.0
    %v1013 = vand.u32 %v64, 4294901760
    %v1014 = vsub.f32 %v64, %v1013
    %v1015 = vand.u32 %v1014, 4294901760
    %1016 = vmatpush1.msra.mxu0 %v1015
    %1017 = vmatprep.subr.mxu0 0.0
    %v1018 = vand.u32 %v65, 4294901760
    %v1019 = vsub.f32 %v65, %v1018
    %v1020 = vand.u32 %v1019, 4294901760
    %1021 = vmatpush1.msra.mxu0 %v1020
    %1022 = vmatprep.subr.mxu0 0.0
    %v1023 = vand.u32 %v66, 4294901760
    %v1024 = vsub.f32 %v66, %v1023
    %v1025 = vand.u32 %v1024, 4294901760
    %1026 = vmatpush1.msra.mxu0 %v1025
    %1027 = vmatprep.subr.mxu0 0.0
    %v1028 = vand.u32 %v67, 4294901760
    %v1029 = vsub.f32 %v67, %v1028
    %v1030 = vand.u32 %v1029, 4294901760
    %1031 = vmatpush1.msra.mxu0 %v1030
    %1032 = vmatprep.subr.mxu0 0.0
    %v1033 = vand.u32 %v68, 4294901760
    %v1034 = vsub.f32 %v68, %v1033
    %v1035 = vand.u32 %v1034, 4294901760
    %1036 = vmatpush1.msra.mxu0 %v1035
    %1037 = vmatprep.subr.mxu0 0.0
    %v1038 = vand.u32 %v69, 4294901760
    %v1039 = vsub.f32 %v69, %v1038
    %v1040 = vand.u32 %v1039, 4294901760
    %1041 = vmatpush1.msra.mxu0 %v1040
    %1042 = vmatprep.subr.mxu0 0.0
    %v1043 = vand.u32 %v70, 4294901760
    %v1044 = vsub.f32 %v70, %v1043
    %v1045 = vand.u32 %v1044, 4294901760
    %1046 = vmatpush1.msra.mxu0 %v1045
    %1047 = vmatprep.subr.mxu0 0.0
    %v1048 = vand.u32 %v71, 4294901760
    %v1049 = vsub.f32 %v71, %v1048
    %v1050 = vand.u32 %v1049, 4294901760
    %1051 = vmatpush1.msra.mxu0 %v1050
    %1052 = vmatprep.subr.mxu0 0.0
    %1053 = vmatpush1.msra.mxu0 0.0
    %1054 = vmatprep.subr.mxu0 0.0
    %1055 = vmatpush1.msra.mxu0 0.0
    %1056 = vmatprep.subr.mxu0 0.0
    %1057 = vmatpush1.msra.mxu0 0.0
    %1058 = vmatprep.subr.mxu0 0.0
    %1059 = vmatpush1.msra.mxu0 0.0
    %1060 = vmatprep.subr.mxu0 0.0
    %1061 = vmatpush1.msra.mxu0 0.0
    %1062 = vmatprep.subr.mxu0 0.0
    %1063 = vmatpush1.msra.mxu0 0.0
    %1064 = vmatprep.subr.mxu0 0.0
    %1065 = vmatpush1.msra.mxu0 0.0
    %1066 = vmatprep.subr.mxu0 0.0
    %1067 = vmatpush1.msra.mxu0 0.0
    %1068 = vmatprep.subr.mxu0 0.0
    %1069 = vmatpush1.msra.mxu0 0.0
    %1070 = vmatprep.subr.mxu0 0.0
    %1071 = vmatpush1.msra.mxu0 0.0
    %1072 = vmatprep.subr.mxu0 0.0
    %1073 = vmatpush1.msra.mxu0 0.0
    %1074 = vmatprep.subr.mxu0 0.0
    %1075 = vmatpush1.msra.mxu0 0.0
    %1076 = vmatprep.subr.mxu0 0.0
    %1077 = vmatpush1.msra.mxu0 0.0
    %1078 = vmatprep.subr.mxu0 0.0
    %1079 = vmatpush1.msra.mxu0 0.0
    %1080 = vmatprep.subr.mxu0 0.0
    %1081 = vmatpush1.msra.mxu0 0.0
    %1082 = vmatprep.subr.mxu0 0.0
    %1083 = vmatpush1.msra.mxu0 0.0
    %1084 = vmatprep.mubr.f32.mxu0 0.0
    %v1085 = vand.u32 %v40, 4294901760
    %1086 = vmatmul.mubr.f32.gmra.mrb[0].mxu0 %v1085
    %v1087 = vpop.f32.mrb[0].mxu0
    %v1088 = vadd.f32 %v849, %v1087
    %v1089 = vpop.f32.mrb[0].mxu0
    %1090 = vmatprep.mubr.f32.mxu0 0.0
    %v1091 = vand.u32 %v41, 4294901760
    %1092 = vmatmul.mubr.f32.gmra.mrb[0].mxu0 %v1091
    %v1093 = vpop.f32.mrb[0].mxu0
    %v1094 = vadd.f32 %v857, %v1093
    %v1095 = vpop.f32.mrb[0].mxu0
    %1096 = vmatprep.mubr.f32.mxu0 0.0
    %v1097 = vand.u32 %v42, 4294901760
    %1098 = vmatmul.mubr.f32.gmra.mrb[0].mxu0 %v1097
    %v1099 = vpop.f32.mrb[0].mxu0
    %v1100 = vadd.f32 %v865, %v1099
    %v1101 = vpop.f32.mrb[0].mxu0
    %1102 = vmatprep.mubr.f32.mxu0 0.0
    %v1103 = vand.u32 %v43, 4294901760
    %1104 = vmatmul.mubr.f32.gmra.mrb[0].mxu0 %v1103
    %v1105 = vpop.f32.mrb[0].mxu0
    %v1106 = vadd.f32 %v873, %v1105
    %v1107 = vpop.f32.mrb[0].mxu0
    %1108 = vmatprep.mubr.f32.mxu0 0.0
    %v1109 = vand.u32 %v44, 4294901760
    %1110 = vmatmul.mubr.f32.gmra.mrb[0].mxu0 %v1109
    %v1111 = vpop.f32.mrb[0].mxu0
    %v1112 = vadd.f32 %v881, %v1111
    %v1113 = vpop.f32.mrb[0].mxu0
    %1114 = vmatprep.mubr.f32.mxu0 0.0
    %v1115 = vand.u32 %v45, 4294901760
    %1116 = vmatmul.mubr.f32.gmra.mrb[0].mxu0 %v1115
    %v1117 = vpop.f32.mrb[0].mxu0
    %v1118 = vadd.f32 %v889, %v1117
    %v1119 = vpop.f32.mrb[0].mxu0
    %1120 = vmatprep.mubr.f32.mxu0 0.0
    %v1121 = vand.u32 %v46, 4294901760
    %1122 = vmatmul.mubr.f32.gmra.mrb[0].mxu0 %v1121
    %v1123 = vpop.f32.mrb[0].mxu0
    %v1124 = vadd.f32 %v897, %v1123
    %v1125 = vpop.f32.mrb[0].mxu0
    %1126 = vmatprep.mubr.f32.mxu0 0.0
    %v1127 = vand.u32 %v47, 4294901760
    %1128 = vmatmul.mubr.f32.gmra.mrb[0].mxu0 %v1127
    %v1129 = vpop.f32.mrb[0].mxu0
    %v1130 = vadd.f32 %v905, %v1129
    %v1131 = vpop.f32.mrb[0].mxu0
    %1132 = vmatprep.mubr.f32.mxu0 0.0
    %v1133 = vand.u32 %v48, 4294901760
    %1134 = vmatmul.mubr.f32.gmra.mrb[0].mxu0 %v1133
    %v1135 = vpop.f32.mrb[0].mxu0
    %v1136 = vadd.f32 %v913, %v1135
    %v1137 = vpop.f32.mrb[0].mxu0
    %1138 = vmatprep.mubr.f32.mxu0 0.0
    %v1139 = vand.u32 %v49, 4294901760
    %1140 = vmatmul.mubr.f32.gmra.mrb[0].mxu0 %v1139
    %v1141 = vpop.f32.mrb[0].mxu0
    %v1142 = vadd.f32 %v921, %v1141
    %v1143 = vpop.f32.mrb[0].mxu0
    %1144 = vmatprep.mubr.f32.mxu0 0.0
    %v1145 = vand.u32 %v50, 4294901760
    %1146 = vmatmul.mubr.f32.gmra.mrb[0].mxu0 %v1145
    %v1147 = vpop.f32.mrb[0].mxu0
    %v1148 = vadd.f32 %v929, %v1147
    %v1149 = vpop.f32.mrb[0].mxu0
    %1150 = vmatprep.mubr.f32.mxu0 0.0
    %v1151 = vand.u32 %v51, 4294901760
    %1152 = vmatmul.mubr.f32.gmra.mrb[0].mxu0 %v1151
    %v1153 = vpop.f32.mrb[0].mxu0
    %v1154 = vadd.f32 %v937, %v1153
    %v1155 = vpop.f32.mrb[0].mxu0
    %1156 = vmatprep.mubr.f32.mxu0 0.0
    %v1157 = vand.u32 %v52, 4294901760
    %1158 = vmatmul.mubr.f32.gmra.mrb[0].mxu0 %v1157
    %v1159 = vpop.f32.mrb[0].mxu0
    %v1160 = vadd.f32 %v945, %v1159
    %v1161 = vpop.f32.mrb[0].mxu0
    %1162 = vmatprep.mubr.f32.mxu0 0.0
    %v1163 = vand.u32 %v53, 4294901760
    %1164 = vmatmul.mubr.f32.gmra.mrb[0].mxu0 %v1163
    %v1165 = vpop.f32.mrb[0].mxu0
    %v1166 = vadd.f32 %v953, %v1165
    %v1167 = vpop.f32.mrb[0].mxu0
    %1168 = vmatprep.mubr.f32.mxu0 0.0
    %v1169 = vand.u32 %v54, 4294901760
    %1170 = vmatmul.mubr.f32.gmra.mrb[0].mxu0 %v1169
    %v1171 = vpop.f32.mrb[0].mxu0
    %v1172 = vadd.f32 %v961, %v1171
    %v1173 = vpop.f32.mrb[0].mxu0
    %1174 = vmatprep.mubr.f32.mxu0 0.0
    %v1175 = vand.u32 %v55, 4294901760
    %1176 = vmatmul.mubr.f32.gmra.mrb[0].mxu0 %v1175
    %v1177 = vpop.f32.mrb[0].mxu0
    %v1178 = vadd.f32 %v969, %v1177
    %v1179 = vpop.f32.mrb[0].mxu0
    %1180 = vdwg.mxu0
    %1181 = vmatprep.subr.mxu0 0.0
    %v1182 = vand.u32 %v56, 4294901760
    %1183 = vmatpush1.msra.mxu0 %v1182
    %1184 = vmatprep.subr.mxu0 0.0
    %v1185 = vand.u32 %v57, 4294901760
    %1186 = vmatpush1.msra.mxu0 %v1185
    %1187 = vmatprep.subr.mxu0 0.0
    %v1188 = vand.u32 %v58, 4294901760
    %1189 = vmatpush1.msra.mxu0 %v1188
    %1190 = vmatprep.subr.mxu0 0.0
    %v1191 = vand.u32 %v59, 4294901760
    %1192 = vmatpush1.msra.mxu0 %v1191
    %1193 = vmatprep.subr.mxu0 0.0
    %v1194 = vand.u32 %v60, 4294901760
    %1195 = vmatpush1.msra.mxu0 %v1194
    %1196 = vmatprep.subr.mxu0 0.0
    %v1197 = vand.u32 %v61, 4294901760
    %1198 = vmatpush1.msra.mxu0 %v1197
    %1199 = vmatprep.subr.mxu0 0.0
    %v1200 = vand.u32 %v62, 4294901760
    %1201 = vmatpush1.msra.mxu0 %v1200
    %1202 = vmatprep.subr.mxu0 0.0
    %v1203 = vand.u32 %v63, 4294901760
    %1204 = vmatpush1.msra.mxu0 %v1203
    %1205 = vmatprep.subr.mxu0 0.0
    %v1206 = vand.u32 %v64, 4294901760
    %1207 = vmatpush1.msra.mxu0 %v1206
    %1208 = vmatprep.subr.mxu0 0.0
    %v1209 = vand.u32 %v65, 4294901760
    %1210 = vmatpush1.msra.mxu0 %v1209
    %1211 = vmatprep.subr.mxu0 0.0
    %v1212 = vand.u32 %v66, 4294901760
    %1213 = vmatpush1.msra.mxu0 %v1212
    %1214 = vmatprep.subr.mxu0 0.0
    %v1215 = vand.u32 %v67, 4294901760
    %1216 = vmatpush1.msra.mxu0 %v1215
    %1217 = vmatprep.subr.mxu0 0.0
    %v1218 = vand.u32 %v68, 4294901760
    %1219 = vmatpush1.msra.mxu0 %v1218
    %1220 = vmatprep.subr.mxu0 0.0
    %v1221 = vand.u32 %v69, 4294901760
    %1222 = vmatpush1.msra.mxu0 %v1221
    %1223 = vmatprep.subr.mxu0 0.0
    %v1224 = vand.u32 %v70, 4294901760
    %1225 = vmatpush1.msra.mxu0 %v1224
    %1226 = vmatprep.subr.mxu0 0.0
    %v1227 = vand.u32 %v71, 4294901760
    %1228 = vmatpush1.msra.mxu0 %v1227
    %1229 = vmatprep.subr.mxu0 0.0
    %1230 = vmatpush1.msra.mxu0 0.0
    %1231 = vmatprep.subr.mxu0 0.0
    %1232 = vmatpush1.msra.mxu0 0.0
    %1233 = vmatprep.subr.mxu0 0.0
    %1234 = vmatpush1.msra.mxu0 0.0
    %1235 = vmatprep.subr.mxu0 0.0
    %1236 = vmatpush1.msra.mxu0 0.0
    %1237 = vmatprep.subr.mxu0 0.0
    %1238 = vmatpush1.msra.mxu0 0.0
    %1239 = vmatprep.subr.mxu0 0.0
    %1240 = vmatpush1.msra.mxu0 0.0
    %1241 = vmatprep.subr.mxu0 0.0
    %1242 = vmatpush1.msra.mxu0 0.0
    %1243 = vmatprep.subr.mxu0 0.0
    %1244 = vmatpush1.msra.mxu0 0.0
    %1245 = vmatprep.subr.mxu0 0.0
    %1246 = vmatpush1.msra.mxu0 0.0
    %1247 = vmatprep.subr.mxu0 0.0
    %1248 = vmatpush1.msra.mxu0 0.0
    %1249 = vmatprep.subr.mxu0 0.0
    %1250 = vmatpush1.msra.mxu0 0.0
    %1251 = vmatprep.subr.mxu0 0.0
    %1252 = vmatpush1.msra.mxu0 0.0
    %1253 = vmatprep.subr.mxu0 0.0
    %1254 = vmatpush1.msra.mxu0 0.0
    %1255 = vmatprep.subr.mxu0 0.0
    %1256 = vmatpush1.msra.mxu0 0.0
    %1257 = vmatprep.subr.mxu0 0.0
    %1258 = vmatpush1.msra.mxu0 0.0
    %1259 = vmatprep.subr.mxu0 0.0
    %1260 = vmatpush1.msra.mxu0 0.0
    %1261 = vmatprep.mubr.f32.mxu0 0.0
    %v1262 = vand.u32 %v40, 4294901760
    %1263 = vmatmul.mubr.f32.gmra.mrb[0].mxu0 %v1262
    %v1264 = vpop.f32.mrb[0].mxu0
    %v1265 = vadd.f32 %v1088, %v1264
    %v1266 = vpop.f32.mrb[0].mxu0
    %1267 = vmatprep.mubr.f32.mxu0 0.0
    %v1268 = vand.u32 %v41, 4294901760
    %1269 = vmatmul.mubr.f32.gmra.mrb[0].mxu0 %v1268
    %v1270 = vpop.f32.mrb[0].mxu0
    %v1271 = vadd.f32 %v1094, %v1270
    %v1272 = vpop.f32.mrb[0].mxu0
    %1273 = vmatprep.mubr.f32.mxu0 0.0
    %v1274 = vand.u32 %v42, 4294901760
    %1275 = vmatmul.mubr.f32.gmra.mrb[0].mxu0 %v1274
    %v1276 = vpop.f32.mrb[0].mxu0
    %v1277 = vadd.f32 %v1100, %v1276
    %v1278 = vpop.f32.mrb[0].mxu0
    %1279 = vmatprep.mubr.f32.mxu0 0.0
    %v1280 = vand.u32 %v43, 4294901760
    %1281 = vmatmul.mubr.f32.gmra.mrb[0].mxu0 %v1280
    %v1282 = vpop.f32.mrb[0].mxu0
    %v1283 = vadd.f32 %v1106, %v1282
    %v1284 = vpop.f32.mrb[0].mxu0
    %1285 = vmatprep.mubr.f32.mxu0 0.0
    %v1286 = vand.u32 %v44, 4294901760
    %1287 = vmatmul.mubr.f32.gmra.mrb[0].mxu0 %v1286
    %v1288 = vpop.f32.mrb[0].mxu0
    %v1289 = vadd.f32 %v1112, %v1288
    %v1290 = vpop.f32.mrb[0].mxu0
    %1291 = vmatprep.mubr.f32.mxu0 0.0
    %v1292 = vand.u32 %v45, 4294901760
    %1293 = vmatmul.mubr.f32.gmra.mrb[0].mxu0 %v1292
    %v1294 = vpop.f32.mrb[0].mxu0
    %v1295 = vadd.f32 %v1118, %v1294
    %v1296 = vpop.f32.mrb[0].mxu0
    %1297 = vmatprep.mubr.f32.mxu0 0.0
    %v1298 = vand.u32 %v46, 4294901760
    %1299 = vmatmul.mubr.f32.gmra.mrb[0].mxu0 %v1298
    %v1300 = vpop.f32.mrb[0].mxu0
    %v1301 = vadd.f32 %v1124, %v1300
    %v1302 = vpop.f32.mrb[0].mxu0
    %1303 = vmatprep.mubr.f32.mxu0 0.0
    %v1304 = vand.u32 %v47, 4294901760
    %1305 = vmatmul.mubr.f32.gmra.mrb[0].mxu0 %v1304
    %v1306 = vpop.f32.mrb[0].mxu0
    %v1307 = vadd.f32 %v1130, %v1306
    %v1308 = vpop.f32.mrb[0].mxu0
    %1309 = vmatprep.mubr.f32.mxu0 0.0
    %v1310 = vand.u32 %v48, 4294901760
    %1311 = vmatmul.mubr.f32.gmra.mrb[0].mxu0 %v1310
    %v1312 = vpop.f32.mrb[0].mxu0
    %v1313 = vadd.f32 %v1136, %v1312
    %v1314 = vpop.f32.mrb[0].mxu0
    %1315 = vmatprep.mubr.f32.mxu0 0.0
    %v1316 = vand.u32 %v49, 4294901760
    %1317 = vmatmul.mubr.f32.gmra.mrb[0].mxu0 %v1316
    %v1318 = vpop.f32.mrb[0].mxu0
    %v1319 = vadd.f32 %v1142, %v1318
    %v1320 = vpop.f32.mrb[0].mxu0
    %1321 = vmatprep.mubr.f32.mxu0 0.0
    %v1322 = vand.u32 %v50, 4294901760
    %1323 = vmatmul.mubr.f32.gmra.mrb[0].mxu0 %v1322
    %v1324 = vpop.f32.mrb[0].mxu0
    %v1325 = vadd.f32 %v1148, %v1324
    %v1326 = vpop.f32.mrb[0].mxu0
    %1327 = vmatprep.mubr.f32.mxu0 0.0
    %v1328 = vand.u32 %v51, 4294901760
    %1329 = vmatmul.mubr.f32.gmra.mrb[0].mxu0 %v1328
    %v1330 = vpop.f32.mrb[0].mxu0
    %v1331 = vadd.f32 %v1154, %v1330
    %v1332 = vpop.f32.mrb[0].mxu0
    %1333 = vmatprep.mubr.f32.mxu0 0.0
    %v1334 = vand.u32 %v52, 4294901760
    %1335 = vmatmul.mubr.f32.gmra.mrb[0].mxu0 %v1334
    %v1336 = vpop.f32.mrb[0].mxu0
    %v1337 = vadd.f32 %v1160, %v1336
    %v1338 = vpop.f32.mrb[0].mxu0
    %1339 = vmatprep.mubr.f32.mxu0 0.0
    %v1340 = vand.u32 %v53, 4294901760
    %1341 = vmatmul.mubr.f32.gmra.mrb[0].mxu0 %v1340
    %v1342 = vpop.f32.mrb[0].mxu0
    %v1343 = vadd.f32 %v1166, %v1342
    %v1344 = vpop.f32.mrb[0].mxu0
    %1345 = vmatprep.mubr.f32.mxu0 0.0
    %v1346 = vand.u32 %v54, 4294901760
    %1347 = vmatmul.mubr.f32.gmra.mrb[0].mxu0 %v1346
    %v1348 = vpop.f32.mrb[0].mxu0
    %v1349 = vadd.f32 %v1172, %v1348
    %v1350 = vpop.f32.mrb[0].mxu0
    %1351 = vmatprep.mubr.f32.mxu0 0.0
    %v1352 = vand.u32 %v55, 4294901760
    %1353 = vmatmul.mubr.f32.gmra.mrb[0].mxu0 %v1352
    %v1354 = vpop.f32.mrb[0].mxu0
    %v1355 = vadd.f32 %v1178, %v1354
    %v1356 = vpop.f32.mrb[0].mxu0
    %1357 = vdwg.mxu0
    %1358 = vst [vmem:[#allocation7] sm:$0xff] %v1265
    %1359 = vst [vmem:[#allocation7 + $0x8] sm:$0xff] %v1271
    %1360 = vst [vmem:[#allocation7 + $0x10] sm:$0xff] %v1277
    %1361 = vst [vmem:[#allocation7 + $0x18] sm:$0xff] %v1283
    %1362 = vst [vmem:[#allocation7 + $0x20] sm:$0xff] %v1289
    %1363 = vst [vmem:[#allocation7 + $0x28] sm:$0xff] %v1295
    %1364 = vst [vmem:[#allocation7 + $0x30] sm:$0xff] %v1301
    %1365 = vst [vmem:[#allocation7 + $0x38] sm:$0xff] %v1307
    %1366 = vst [vmem:[#allocation7 + $0x40] sm:$0xff] %v1313
    %1367 = vst [vmem:[#allocation7 + $0x48] sm:$0xff] %v1319
    %1368 = vst [vmem:[#allocation7 + $0x50] sm:$0xff] %v1325
    %1369 = vst [vmem:[#allocation7 + $0x58] sm:$0xff] %v1331
    %1370 = vst [vmem:[#allocation7 + $0x60] sm:$0xff] %v1337
    %1371 = vst [vmem:[#allocation7 + $0x68] sm:$0xff] %v1343
    %1372 = vst [vmem:[#allocation7 + $0x70] sm:$0xff] %v1349
    %1373 = vst [vmem:[#allocation7 + $0x78] sm:$0xff] %v1355
    %s1374 = scalar_lea.vmem [#allocation5], 128
    %v1375 = vld [vmem:[%s1374] sm:$0xff]
    %v1376 = vld [vmem:[%s1374 + $0x8] sm:$0xff]
    %v1377 = vld [vmem:[%s1374 + $0x10] sm:$0xff]
    %v1378 = vld [vmem:[%s1374 + $0x18] sm:$0xff]
    %v1379 = vld [vmem:[%s1374 + $0x20] sm:$0xff]
    %v1380 = vld [vmem:[%s1374 + $0x28] sm:$0xff]
    %v1381 = vld [vmem:[%s1374 + $0x30] sm:$0xff]
    %v1382 = vld [vmem:[%s1374 + $0x38] sm:$0xff]
    %v1383 = vld [vmem:[%s1374 + $0x40] sm:$0xff]
    %v1384 = vld [vmem:[%s1374 + $0x48] sm:$0xff]
    %v1385 = vld [vmem:[%s1374 + $0x50] sm:$0xff]
    %v1386 = vld [vmem:[%s1374 + $0x58] sm:$0xff]
    %v1387 = vld [vmem:[%s1374 + $0x60] sm:$0xff]
    %v1388 = vld [vmem:[%s1374 + $0x68] sm:$0xff]
    %v1389 = vld [vmem:[%s1374 + $0x70] sm:$0xff]
    %v1390 = vld [vmem:[%s1374 + $0x78] sm:$0xff]
    %1391 = vmatprep.subr.mxu0 0.0
    %v1392 = vand.u32 %v1375, 4294901760
    %1393 = vmatpush1.msra.mxu0 %v1392
    %1394 = vmatprep.subr.mxu0 0.0
    %v1395 = vand.u32 %v1376, 4294901760
    %1396 = vmatpush1.msra.mxu0 %v1395
    %1397 = vmatprep.subr.mxu0 0.0
    %v1398 = vand.u32 %v1377, 4294901760
    %1399 = vmatpush1.msra.mxu0 %v1398
    %1400 = vmatprep.subr.mxu0 0.0
    %v1401 = vand.u32 %v1378, 4294901760
    %1402 = vmatpush1.msra.mxu0 %v1401
    %1403 = vmatprep.subr.mxu0 0.0
    %v1404 = vand.u32 %v1379, 4294901760
    %1405 = vmatpush1.msra.mxu0 %v1404
    %1406 = vmatprep.subr.mxu0 0.0
    %v1407 = vand.u32 %v1380, 4294901760
    %1408 = vmatpush1.msra.mxu0 %v1407
    %1409 = vmatprep.subr.mxu0 0.0
    %v1410 = vand.u32 %v1381, 4294901760
    %1411 = vmatpush1.msra.mxu0 %v1410
    %1412 = vmatprep.subr.mxu0 0.0
    %v1413 = vand.u32 %v1382, 4294901760
    %1414 = vmatpush1.msra.mxu0 %v1413
    %1415 = vmatprep.subr.mxu0 0.0
    %v1416 = vand.u32 %v1383, 4294901760
    %1417 = vmatpush1.msra.mxu0 %v1416
    %1418 = vmatprep.subr.mxu0 0.0
    %v1419 = vand.u32 %v1384, 4294901760
    %1420 = vmatpush1.msra.mxu0 %v1419
    %1421 = vmatprep.subr.mxu0 0.0
    %v1422 = vand.u32 %v1385, 4294901760
    %1423 = vmatpush1.msra.mxu0 %v1422
    %1424 = vmatprep.subr.mxu0 0.0
    %v1425 = vand.u32 %v1386, 4294901760
    %1426 = vmatpush1.msra.mxu0 %v1425
    %1427 = vmatprep.subr.mxu0 0.0
    %v1428 = vand.u32 %v1387, 4294901760
    %1429 = vmatpush1.msra.mxu0 %v1428
    %1430 = vmatprep.subr.mxu0 0.0
    %v1431 = vand.u32 %v1388, 4294901760
    %1432 = vmatpush1.msra.mxu0 %v1431
    %1433 = vmatprep.subr.mxu0 0.0
    %v1434 = vand.u32 %v1389, 4294901760
    %1435 = vmatpush1.msra.mxu0 %v1434
    %1436 = vmatprep.subr.mxu0 0.0
    %v1437 = vand.u32 %v1390, 4294901760
    %1438 = vmatpush1.msra.mxu0 %v1437
    %1439 = vmatprep.subr.mxu0 0.0
    %1440 = vmatpush1.msra.mxu0 0.0
    %1441 = vmatprep.subr.mxu0 0.0
    %1442 = vmatpush1.msra.mxu0 0.0
    %1443 = vmatprep.subr.mxu0 0.0
    %1444 = vmatpush1.msra.mxu0 0.0
    %1445 = vmatprep.subr.mxu0 0.0
    %1446 = vmatpush1.msra.mxu0 0.0
    %1447 = vmatprep.subr.mxu0 0.0
    %1448 = vmatpush1.msra.mxu0 0.0
    %1449 = vmatprep.subr.mxu0 0.0
    %1450 = vmatpush1.msra.mxu0 0.0
    %1451 = vmatprep.subr.mxu0 0.0
    %1452 = vmatpush1.msra.mxu0 0.0
    %1453 = vmatprep.subr.mxu0 0.0
    %1454 = vmatpush1.msra.mxu0 0.0
    %1455 = vmatprep.subr.mxu0 0.0
    %1456 = vmatpush1.msra.mxu0 0.0
    %1457 = vmatprep.subr.mxu0 0.0
    %1458 = vmatpush1.msra.mxu0 0.0
    %1459 = vmatprep.subr.mxu0 0.0
    %1460 = vmatpush1.msra.mxu0 0.0
    %1461 = vmatprep.subr.mxu0 0.0
    %1462 = vmatpush1.msra.mxu0 0.0
    %1463 = vmatprep.subr.mxu0 0.0
    %1464 = vmatpush1.msra.mxu0 0.0
    %1465 = vmatprep.subr.mxu0 0.0
    %1466 = vmatpush1.msra.mxu0 0.0
    %1467 = vmatprep.subr.mxu0 0.0
    %1468 = vmatpush1.msra.mxu0 0.0
    %1469 = vmatprep.subr.mxu0 0.0
    %1470 = vmatpush1.msra.mxu0 0.0
    %1471 = vmatprep.mubr.f32.mxu0 0.0
    %v1472 = vand.u32 %v40, 4294901760
    %v1473 = vsub.f32 %v40, %v1472
    %v1474 = vand.u32 %v1473, 4294901760
    %v1475 = vsub.f32 %v1473, %v1474
    %v1476 = vand.u32 %v1475, 4294901760
    %1477 = vmatmul.mubr.f32.gmra.mrb[0].mxu0 %v1476
    %v1478 = vpop.f32.mrb[0].mxu0
    %v1479 = vadd.f32 0.0, %v1478
    %v1480 = vpop.f32.mrb[0].mxu0
    %1481 = vmatprep.mubr.f32.mxu0 0.0
    %v1482 = vand.u32 %v41, 4294901760
    %v1483 = vsub.f32 %v41, %v1482
    %v1484 = vand.u32 %v1483, 4294901760
    %v1485 = vsub.f32 %v1483, %v1484
    %v1486 = vand.u32 %v1485, 4294901760
    %1487 = vmatmul.mubr.f32.gmra.mrb[0].mxu0 %v1486
    %v1488 = vpop.f32.mrb[0].mxu0
    %v1489 = vadd.f32 0.0, %v1488
    %v1490 = vpop.f32.mrb[0].mxu0
    %1491 = vmatprep.mubr.f32.mxu0 0.0
    %v1492 = vand.u32 %v42, 4294901760
    %v1493 = vsub.f32 %v42, %v1492
    %v1494 = vand.u32 %v1493, 4294901760
    %v1495 = vsub.f32 %v1493, %v1494
    %v1496 = vand.u32 %v1495, 4294901760
    %1497 = vmatmul.mubr.f32.gmra.mrb[0].mxu0 %v1496
    %v1498 = vpop.f32.mrb[0].mxu0
    %v1499 = vadd.f32 0.0, %v1498
    %v1500 = vpop.f32.mrb[0].mxu0
    %1501 = vmatprep.mubr.f32.mxu0 0.0
    %v1502 = vand.u32 %v43, 4294901760
    %v1503 = vsub.f32 %v43, %v1502
    %v1504 = vand.u32 %v1503, 4294901760
    %v1505 = vsub.f32 %v1503, %v1504
    %v1506 = vand.u32 %v1505, 4294901760
    %1507 = vmatmul.mubr.f32.gmra.mrb[0].mxu0 %v1506
    %v1508 = vpop.f32.mrb[0].mxu0
    %v1509 = vadd.f32 0.0, %v1508
    %v1510 = vpop.f32.mrb[0].mxu0
    %1511 = vmatprep.mubr.f32.mxu0 0.0
    %v1512 = vand.u32 %v44, 4294901760
    %v1513 = vsub.f32 %v44, %v1512
    %v1514 = vand.u32 %v1513, 4294901760
    %v1515 = vsub.f32 %v1513, %v1514
    %v1516 = vand.u32 %v1515, 4294901760
    %1517 = vmatmul.mubr.f32.gmra.mrb[0].mxu0 %v1516
    %v1518 = vpop.f32.mrb[0].mxu0
    %v1519 = vadd.f32 0.0, %v1518
    %v1520 = vpop.f32.mrb[0].mxu0
    %1521 = vmatprep.mubr.f32.mxu0 0.0
    %v1522 = vand.u32 %v45, 4294901760
    %v1523 = vsub.f32 %v45, %v1522
    %v1524 = vand.u32 %v1523, 4294901760
    %v1525 = vsub.f32 %v1523, %v1524
    %v1526 = vand.u32 %v1525, 4294901760
    %1527 = vmatmul.mubr.f32.gmra.mrb[0].mxu0 %v1526
    %v1528 = vpop.f32.mrb[0].mxu0
    %v1529 = vadd.f32 0.0, %v1528
    %v1530 = vpop.f32.mrb[0].mxu0
    %1531 = vmatprep.mubr.f32.mxu0 0.0
    %v1532 = vand.u32 %v46, 4294901760
    %v1533 = vsub.f32 %v46, %v1532
    %v1534 = vand.u32 %v1533, 4294901760
    %v1535 = vsub.f32 %v1533, %v1534
    %v1536 = vand.u32 %v1535, 4294901760
    %1537 = vmatmul.mubr.f32.gmra.mrb[0].mxu0 %v1536
    %v1538 = vpop.f32.mrb[0].mxu0
    %v1539 = vadd.f32 0.0, %v1538
    %v1540 = vpop.f32.mrb[0].mxu0
    %1541 = vmatprep.mubr.f32.mxu0 0.0
    %v1542 = vand.u32 %v47, 4294901760
    %v1543 = vsub.f32 %v47, %v1542
    %v1544 = vand.u32 %v1543, 4294901760
    %v1545 = vsub.f32 %v1543, %v1544
    %v1546 = vand.u32 %v1545, 4294901760
    %1547 = vmatmul.mubr.f32.gmra.mrb[0].mxu0 %v1546
    %v1548 = vpop.f32.mrb[0].mxu0
    %v1549 = vadd.f32 0.0, %v1548
    %v1550 = vpop.f32.mrb[0].mxu0
    %1551 = vmatprep.mubr.f32.mxu0 0.0
    %v1552 = vand.u32 %v48, 4294901760
    %v1553 = vsub.f32 %v48, %v1552
    %v1554 = vand.u32 %v1553, 4294901760
    %v1555 = vsub.f32 %v1553, %v1554
    %v1556 = vand.u32 %v1555, 4294901760
    %1557 = vmatmul.mubr.f32.gmra.mrb[0].mxu0 %v1556
    %v1558 = vpop.f32.mrb[0].mxu0
    %v1559 = vadd.f32 0.0, %v1558
    %v1560 = vpop.f32.mrb[0].mxu0
    %1561 = vmatprep.mubr.f32.mxu0 0.0
    %v1562 = vand.u32 %v49, 4294901760
    %v1563 = vsub.f32 %v49, %v1562
    %v1564 = vand.u32 %v1563, 4294901760
    %v1565 = vsub.f32 %v1563, %v1564
    %v1566 = vand.u32 %v1565, 4294901760
    %1567 = vmatmul.mubr.f32.gmra.mrb[0].mxu0 %v1566
    %v1568 = vpop.f32.mrb[0].mxu0
    %v1569 = vadd.f32 0.0, %v1568
    %v1570 = vpop.f32.mrb[0].mxu0
    %1571 = vmatprep.mubr.f32.mxu0 0.0
    %v1572 = vand.u32 %v50, 4294901760
    %v1573 = vsub.f32 %v50, %v1572
    %v1574 = vand.u32 %v1573, 4294901760
    %v1575 = vsub.f32 %v1573, %v1574
    %v1576 = vand.u32 %v1575, 4294901760
    %1577 = vmatmul.mubr.f32.gmra.mrb[0].mxu0 %v1576
    %v1578 = vpop.f32.mrb[0].mxu0
    %v1579 = vadd.f32 0.0, %v1578
    %v1580 = vpop.f32.mrb[0].mxu0
    %1581 = vmatprep.mubr.f32.mxu0 0.0
    %v1582 = vand.u32 %v51, 4294901760
    %v1583 = vsub.f32 %v51, %v1582
    %v1584 = vand.u32 %v1583, 4294901760
    %v1585 = vsub.f32 %v1583, %v1584
    %v1586 = vand.u32 %v1585, 4294901760
    %1587 = vmatmul.mubr.f32.gmra.mrb[0].mxu0 %v1586
    %v1588 = vpop.f32.mrb[0].mxu0
    %v1589 = vadd.f32 0.0, %v1588
    %v1590 = vpop.f32.mrb[0].mxu0
    %1591 = vmatprep.mubr.f32.mxu0 0.0
    %v1592 = vand.u32 %v52, 4294901760
    %v1593 = vsub.f32 %v52, %v1592
    %v1594 = vand.u32 %v1593, 4294901760
    %v1595 = vsub.f32 %v1593, %v1594
    %v1596 = vand.u32 %v1595, 4294901760
    %1597 = vmatmul.mubr.f32.gmra.mrb[0].mxu0 %v1596
    %v1598 = vpop.f32.mrb[0].mxu0
    %v1599 = vadd.f32 0.0, %v1598
    %v1600 = vpop.f32.mrb[0].mxu0
    %1601 = vmatprep.mubr.f32.mxu0 0.0
    %v1602 = vand.u32 %v53, 4294901760
    %v1603 = vsub.f32 %v53, %v1602
    %v1604 = vand.u32 %v1603, 4294901760
    %v1605 = vsub.f32 %v1603, %v1604
    %v1606 = vand.u32 %v1605, 4294901760
    %1607 = vmatmul.mubr.f32.gmra.mrb[0].mxu0 %v1606
    %v1608 = vpop.f32.mrb[0].mxu0
    %v1609 = vadd.f32 0.0, %v1608
    %v1610 = vpop.f32.mrb[0].mxu0
    %1611 = vmatprep.mubr.f32.mxu0 0.0
    %v1612 = vand.u32 %v54, 4294901760
    %v1613 = vsub.f32 %v54, %v1612
    %v1614 = vand.u32 %v1613, 4294901760
    %v1615 = vsub.f32 %v1613, %v1614
    %v1616 = vand.u32 %v1615, 4294901760
    %1617 = vmatmul.mubr.f32.gmra.mrb[0].mxu0 %v1616
    %v1618 = vpop.f32.mrb[0].mxu0
    %v1619 = vadd.f32 0.0, %v1618
    %v1620 = vpop.f32.mrb[0].mxu0
    %1621 = vmatprep.mubr.f32.mxu0 0.0
    %v1622 = vand.u32 %v55, 4294901760
    %v1623 = vsub.f32 %v55, %v1622
    %v1624 = vand.u32 %v1623, 4294901760
    %v1625 = vsub.f32 %v1623, %v1624
    %v1626 = vand.u32 %v1625, 4294901760
    %1627 = vmatmul.mubr.f32.gmra.mrb[0].mxu0 %v1626
    %v1628 = vpop.f32.mrb[0].mxu0
    %v1629 = vadd.f32 0.0, %v1628
    %v1630 = vpop.f32.mrb[0].mxu0
    %1631 = vdwg.mxu0
    %1632 = vmatprep.subr.mxu0 0.0
    %v1633 = vand.u32 %v1375, 4294901760
    %v1634 = vsub.f32 %v1375, %v1633
    %v1635 = vand.u32 %v1634, 4294901760
    %v1636 = vsub.f32 %v1634, %v1635
    %v1637 = vand.u32 %v1636, 4294901760
    %1638 = vmatpush1.msra.mxu0 %v1637
    %1639 = vmatprep.subr.mxu0 0.0
    %v1640 = vand.u32 %v1376, 4294901760
    %v1641 = vsub.f32 %v1376, %v1640
    %v1642 = vand.u32 %v1641, 4294901760
    %v1643 = vsub.f32 %v1641, %v1642
    %v1644 = vand.u32 %v1643, 4294901760
    %1645 = vmatpush1.msra.mxu0 %v1644
    %1646 = vmatprep.subr.mxu0 0.0
    %v1647 = vand.u32 %v1377, 4294901760
    %v1648 = vsub.f32 %v1377, %v1647
    %v1649 = vand.u32 %v1648, 4294901760
    %v1650 = vsub.f32 %v1648, %v1649
    %v1651 = vand.u32 %v1650, 4294901760
    %1652 = vmatpush1.msra.mxu0 %v1651
    %1653 = vmatprep.subr.mxu0 0.0
    %v1654 = vand.u32 %v1378, 4294901760
    %v1655 = vsub.f32 %v1378, %v1654
    %v1656 = vand.u32 %v1655, 4294901760
    %v1657 = vsub.f32 %v1655, %v1656
    %v1658 = vand.u32 %v1657, 4294901760
    %1659 = vmatpush1.msra.mxu0 %v1658
    %1660 = vmatprep.subr.mxu0 0.0
    %v1661 = vand.u32 %v1379, 4294901760
    %v1662 = vsub.f32 %v1379, %v1661
    %v1663 = vand.u32 %v1662, 4294901760
    %v1664 = vsub.f32 %v1662, %v1663
    %v1665 = vand.u32 %v1664, 4294901760
    %1666 = vmatpush1.msra.mxu0 %v1665
    %1667 = vmatprep.subr.mxu0 0.0
    %v1668 = vand.u32 %v1380, 4294901760
    %v1669 = vsub.f32 %v1380, %v1668
    %v1670 = vand.u32 %v1669, 4294901760
    %v1671 = vsub.f32 %v1669, %v1670
    %v1672 = vand.u32 %v1671, 4294901760
    %1673 = vmatpush1.msra.mxu0 %v1672
    %1674 = vmatprep.subr.mxu0 0.0
    %v1675 = vand.u32 %v1381, 4294901760
    %v1676 = vsub.f32 %v1381, %v1675
    %v1677 = vand.u32 %v1676, 4294901760
    %v1678 = vsub.f32 %v1676, %v1677
    %v1679 = vand.u32 %v1678, 4294901760
    %1680 = vmatpush1.msra.mxu0 %v1679
    %1681 = vmatprep.subr.mxu0 0.0
    %v1682 = vand.u32 %v1382, 4294901760
    %v1683 = vsub.f32 %v1382, %v1682
    %v1684 = vand.u32 %v1683, 4294901760
    %v1685 = vsub.f32 %v1683, %v1684
    %v1686 = vand.u32 %v1685, 4294901760
    %1687 = vmatpush1.msra.mxu0 %v1686
    %1688 = vmatprep.subr.mxu0 0.0
    %v1689 = vand.u32 %v1383, 4294901760
    %v1690 = vsub.f32 %v1383, %v1689
    %v1691 = vand.u32 %v1690, 4294901760
    %v1692 = vsub.f32 %v1690, %v1691
    %v1693 = vand.u32 %v1692, 4294901760
    %1694 = vmatpush1.msra.mxu0 %v1693
    %1695 = vmatprep.subr.mxu0 0.0
    %v1696 = vand.u32 %v1384, 4294901760
    %v1697 = vsub.f32 %v1384, %v1696
    %v1698 = vand.u32 %v1697, 4294901760
    %v1699 = vsub.f32 %v1697, %v1698
    %v1700 = vand.u32 %v1699, 4294901760
    %1701 = vmatpush1.msra.mxu0 %v1700
    %1702 = vmatprep.subr.mxu0 0.0
    %v1703 = vand.u32 %v1385, 4294901760
    %v1704 = vsub.f32 %v1385, %v1703
    %v1705 = vand.u32 %v1704, 4294901760
    %v1706 = vsub.f32 %v1704, %v1705
    %v1707 = vand.u32 %v1706, 4294901760
    %1708 = vmatpush1.msra.mxu0 %v1707
    %1709 = vmatprep.subr.mxu0 0.0
    %v1710 = vand.u32 %v1386, 4294901760
    %v1711 = vsub.f32 %v1386, %v1710
    %v1712 = vand.u32 %v1711, 4294901760
    %v1713 = vsub.f32 %v1711, %v1712
    %v1714 = vand.u32 %v1713, 4294901760
    %1715 = vmatpush1.msra.mxu0 %v1714
    %1716 = vmatprep.subr.mxu0 0.0
    %v1717 = vand.u32 %v1387, 4294901760
    %v1718 = vsub.f32 %v1387, %v1717
    %v1719 = vand.u32 %v1718, 4294901760
    %v1720 = vsub.f32 %v1718, %v1719
    %v1721 = vand.u32 %v1720, 4294901760
    %1722 = vmatpush1.msra.mxu0 %v1721
    %1723 = vmatprep.subr.mxu0 0.0
    %v1724 = vand.u32 %v1388, 4294901760
    %v1725 = vsub.f32 %v1388, %v1724
    %v1726 = vand.u32 %v1725, 4294901760
    %v1727 = vsub.f32 %v1725, %v1726
    %v1728 = vand.u32 %v1727, 4294901760
    %1729 = vmatpush1.msra.mxu0 %v1728
    %1730 = vmatprep.subr.mxu0 0.0
    %v1731 = vand.u32 %v1389, 4294901760
    %v1732 = vsub.f32 %v1389, %v1731
    %v1733 = vand.u32 %v1732, 4294901760
    %v1734 = vsub.f32 %v1732, %v1733
    %v1735 = vand.u32 %v1734, 4294901760
    %1736 = vmatpush1.msra.mxu0 %v1735
    %1737 = vmatprep.subr.mxu0 0.0
    %v1738 = vand.u32 %v1390, 4294901760
    %v1739 = vsub.f32 %v1390, %v1738
    %v1740 = vand.u32 %v1739, 4294901760
    %v1741 = vsub.f32 %v1739, %v1740
    %v1742 = vand.u32 %v1741, 4294901760
    %1743 = vmatpush1.msra.mxu0 %v1742
    %1744 = vmatprep.subr.mxu0 0.0
    %1745 = vmatpush1.msra.mxu0 0.0
    %1746 = vmatprep.subr.mxu0 0.0
    %1747 = vmatpush1.msra.mxu0 0.0
    %1748 = vmatprep.subr.mxu0 0.0
    %1749 = vmatpush1.msra.mxu0 0.0
    %1750 = vmatprep.subr.mxu0 0.0
    %1751 = vmatpush1.msra.mxu0 0.0
    %1752 = vmatprep.subr.mxu0 0.0
    %1753 = vmatpush1.msra.mxu0 0.0
    %1754 = vmatprep.subr.mxu0 0.0
    %1755 = vmatpush1.msra.mxu0 0.0
    %1756 = vmatprep.subr.mxu0 0.0
    %1757 = vmatpush1.msra.mxu0 0.0
    %1758 = vmatprep.subr.mxu0 0.0
    %1759 = vmatpush1.msra.mxu0 0.0
    %1760 = vmatprep.subr.mxu0 0.0
    %1761 = vmatpush1.msra.mxu0 0.0
    %1762 = vmatprep.subr.mxu0 0.0
    %1763 = vmatpush1.msra.mxu0 0.0
    %1764 = vmatprep.subr.mxu0 0.0
    %1765 = vmatpush1.msra.mxu0 0.0
    %1766 = vmatprep.subr.mxu0 0.0
    %1767 = vmatpush1.msra.mxu0 0.0
    %1768 = vmatprep.subr.mxu0 0.0
    %1769 = vmatpush1.msra.mxu0 0.0
    %1770 = vmatprep.subr.mxu0 0.0
    %1771 = vmatpush1.msra.mxu0 0.0
    %1772 = vmatprep.subr.mxu0 0.0
    %1773 = vmatpush1.msra.mxu0 0.0
    %1774 = vmatprep.subr.mxu0 0.0
    %1775 = vmatpush1.msra.mxu0 0.0
    %1776 = vmatprep.mubr.f32.mxu0 0.0
    %v1777 = vand.u32 %v40, 4294901760
    %1778 = vmatmul.mubr.f32.gmra.mrb[0].mxu0 %v1777
    %v1779 = vpop.f32.mrb[0].mxu0
    %v1780 = vadd.f32 %v1479, %v1779
    %v1781 = vpop.f32.mrb[0].mxu0
    %1782 = vmatprep.mubr.f32.mxu0 0.0
    %v1783 = vand.u32 %v41, 4294901760
    %1784 = vmatmul.mubr.f32.gmra.mrb[0].mxu0 %v1783
    %v1785 = vpop.f32.mrb[0].mxu0
    %v1786 = vadd.f32 %v1489, %v1785
    %v1787 = vpop.f32.mrb[0].mxu0
    %1788 = vmatprep.mubr.f32.mxu0 0.0
    %v1789 = vand.u32 %v42, 4294901760
    %1790 = vmatmul.mubr.f32.gmra.mrb[0].mxu0 %v1789
    %v1791 = vpop.f32.mrb[0].mxu0
    %v1792 = vadd.f32 %v1499, %v1791
    %v1793 = vpop.f32.mrb[0].mxu0
    %1794 = vmatprep.mubr.f32.mxu0 0.0
    %v1795 = vand.u32 %v43, 4294901760
    %1796 = vmatmul.mubr.f32.gmra.mrb[0].mxu0 %v1795
    %v1797 = vpop.f32.mrb[0].mxu0
    %v1798 = vadd.f32 %v1509, %v1797
    %v1799 = vpop.f32.mrb[0].mxu0
    %1800 = vmatprep.mubr.f32.mxu0 0.0
    %v1801 = vand.u32 %v44, 4294901760
    %1802 = vmatmul.mubr.f32.gmra.mrb[0].mxu0 %v1801
    %v1803 = vpop.f32.mrb[0].mxu0
    %v1804 = vadd.f32 %v1519, %v1803
    %v1805 = vpop.f32.mrb[0].mxu0
    %1806 = vmatprep.mubr.f32.mxu0 0.0
    %v1807 = vand.u32 %v45, 4294901760
    %1808 = vmatmul.mubr.f32.gmra.mrb[0].mxu0 %v1807
    %v1809 = vpop.f32.mrb[0].mxu0
    %v1810 = vadd.f32 %v1529, %v1809
    %v1811 = vpop.f32.mrb[0].mxu0
    %1812 = vmatprep.mubr.f32.mxu0 0.0
    %v1813 = vand.u32 %v46, 4294901760
    %1814 = vmatmul.mubr.f32.gmra.mrb[0].mxu0 %v1813
    %v1815 = vpop.f32.mrb[0].mxu0
    %v1816 = vadd.f32 %v1539, %v1815
    %v1817 = vpop.f32.mrb[0].mxu0
    %1818 = vmatprep.mubr.f32.mxu0 0.0
    %v1819 = vand.u32 %v47, 4294901760
    %1820 = vmatmul.mubr.f32.gmra.mrb[0].mxu0 %v1819
    %v1821 = vpop.f32.mrb[0].mxu0
    %v1822 = vadd.f32 %v1549, %v1821
    %v1823 = vpop.f32.mrb[0].mxu0
    %1824 = vmatprep.mubr.f32.mxu0 0.0
    %v1825 = vand.u32 %v48, 4294901760
    %1826 = vmatmul.mubr.f32.gmra.mrb[0].mxu0 %v1825
    %v1827 = vpop.f32.mrb[0].mxu0
    %v1828 = vadd.f32 %v1559, %v1827
    %v1829 = vpop.f32.mrb[0].mxu0
    %1830 = vmatprep.mubr.f32.mxu0 0.0
    %v1831 = vand.u32 %v49, 4294901760
    %1832 = vmatmul.mubr.f32.gmra.mrb[0].mxu0 %v1831
    %v1833 = vpop.f32.mrb[0].mxu0
    %v1834 = vadd.f32 %v1569, %v1833
    %v1835 = vpop.f32.mrb[0].mxu0
    %1836 = vmatprep.mubr.f32.mxu0 0.0
    %v1837 = vand.u32 %v50, 4294901760
    %1838 = vmatmul.mubr.f32.gmra.mrb[0].mxu0 %v1837
    %v1839 = vpop.f32.mrb[0].mxu0
    %v1840 = vadd.f32 %v1579, %v1839
    %v1841 = vpop.f32.mrb[0].mxu0
    %1842 = vmatprep.mubr.f32.mxu0 0.0
    %v1843 = vand.u32 %v51, 4294901760
    %1844 = vmatmul.mubr.f32.gmra.mrb[0].mxu0 %v1843
    %v1845 = vpop.f32.mrb[0].mxu0
    %v1846 = vadd.f32 %v1589, %v1845
    %v1847 = vpop.f32.mrb[0].mxu0
    %1848 = vmatprep.mubr.f32.mxu0 0.0
    %v1849 = vand.u32 %v52, 4294901760
    %1850 = vmatmul.mubr.f32.gmra.mrb[0].mxu0 %v1849
    %v1851 = vpop.f32.mrb[0].mxu0
    %v1852 = vadd.f32 %v1599, %v1851
    %v1853 = vpop.f32.mrb[0].mxu0
    %1854 = vmatprep.mubr.f32.mxu0 0.0
    %v1855 = vand.u32 %v53, 4294901760
    %1856 = vmatmul.mubr.f32.gmra.mrb[0].mxu0 %v1855
    %v1857 = vpop.f32.mrb[0].mxu0
    %v1858 = vadd.f32 %v1609, %v1857
    %v1859 = vpop.f32.mrb[0].mxu0
    %1860 = vmatprep.mubr.f32.mxu0 0.0
    %v1861 = vand.u32 %v54, 4294901760
    %1862 = vmatmul.mubr.f32.gmra.mrb[0].mxu0 %v1861
    %v1863 = vpop.f32.mrb[0].mxu0
    %v1864 = vadd.f32 %v1619, %v1863
    %v1865 = vpop.f32.mrb[0].mxu0
    %1866 = vmatprep.mubr.f32.mxu0 0.0
    %v1867 = vand.u32 %v55, 4294901760
    %1868 = vmatmul.mubr.f32.gmra.mrb[0].mxu0 %v1867
    %v1869 = vpop.f32.mrb[0].mxu0
    %v1870 = vadd.f32 %v1629, %v1869
    %v1871 = vpop.f32.mrb[0].mxu0
    %1872 = vdwg.mxu0
    %1873 = vmatprep.subr.mxu0 0.0
    %v1874 = vand.u32 %v1375, 4294901760
    %v1875 = vsub.f32 %v1375, %v1874
    %1876 = vmatpush1.msra.mxu0 %v1875
    %1877 = vmatprep.subr.mxu0 0.0
    %v1878 = vand.u32 %v1376, 4294901760
    %v1879 = vsub.f32 %v1376, %v1878
    %1880 = vmatpush1.msra.mxu0 %v1879
    %1881 = vmatprep.subr.mxu0 0.0
    %v1882 = vand.u32 %v1377, 4294901760
    %v1883 = vsub.f32 %v1377, %v1882
    %1884 = vmatpush1.msra.mxu0 %v1883
    %1885 = vmatprep.subr.mxu0 0.0
    %v1886 = vand.u32 %v1378, 4294901760
    %v1887 = vsub.f32 %v1378, %v1886
    %1888 = vmatpush1.msra.mxu0 %v1887
    %1889 = vmatprep.subr.mxu0 0.0
    %v1890 = vand.u32 %v1379, 4294901760
    %v1891 = vsub.f32 %v1379, %v1890
    %1892 = vmatpush1.msra.mxu0 %v1891
    %1893 = vmatprep.subr.mxu0 0.0
    %v1894 = vand.u32 %v1380, 4294901760
    %v1895 = vsub.f32 %v1380, %v1894
    %1896 = vmatpush1.msra.mxu0 %v1895
    %1897 = vmatprep.subr.mxu0 0.0
    %v1898 = vand.u32 %v1381, 4294901760
    %v1899 = vsub.f32 %v1381, %v1898
    %1900 = vmatpush1.msra.mxu0 %v1899
    %1901 = vmatprep.subr.mxu0 0.0
    %v1902 = vand.u32 %v1382, 4294901760
    %v1903 = vsub.f32 %v1382, %v1902
    %1904 = vmatpush1.msra.mxu0 %v1903
    %1905 = vmatprep.subr.mxu0 0.0
    %v1906 = vand.u32 %v1383, 4294901760
    %v1907 = vsub.f32 %v1383, %v1906
    %1908 = vmatpush1.msra.mxu0 %v1907
    %1909 = vmatprep.subr.mxu0 0.0
    %v1910 = vand.u32 %v1384, 4294901760
    %v1911 = vsub.f32 %v1384, %v1910
    %1912 = vmatpush1.msra.mxu0 %v1911
    %1913 = vmatprep.subr.mxu0 0.0
    %v1914 = vand.u32 %v1385, 4294901760
    %v1915 = vsub.f32 %v1385, %v1914
    %1916 = vmatpush1.msra.mxu0 %v1915
    %1917 = vmatprep.subr.mxu0 0.0
    %v1918 = vand.u32 %v1386, 4294901760
    %v1919 = vsub.f32 %v1386, %v1918
    %1920 = vmatpush1.msra.mxu0 %v1919
    %1921 = vmatprep.subr.mxu0 0.0
    %v1922 = vand.u32 %v1387, 4294901760
    %v1923 = vsub.f32 %v1387, %v1922
    %1924 = vmatpush1.msra.mxu0 %v1923
    %1925 = vmatprep.subr.mxu0 0.0
    %v1926 = vand.u32 %v1388, 4294901760
    %v1927 = vsub.f32 %v1388, %v1926
    %1928 = vmatpush1.msra.mxu0 %v1927
    %1929 = vmatprep.subr.mxu0 0.0
    %v1930 = vand.u32 %v1389, 4294901760
    %v1931 = vsub.f32 %v1389, %v1930
    %1932 = vmatpush1.msra.mxu0 %v1931
    %1933 = vmatprep.subr.mxu0 0.0
    %v1934 = vand.u32 %v1390, 4294901760
    %v1935 = vsub.f32 %v1390, %v1934
    %1936 = vmatpush1.msra.mxu0 %v1935
    %1937 = vmatprep.subr.mxu0 0.0
    %1938 = vmatpush1.msra.mxu0 0.0
    %1939 = vmatprep.subr.mxu0 0.0
    %1940 = vmatpush1.msra.mxu0 0.0
    %1941 = vmatprep.subr.mxu0 0.0
    %1942 = vmatpush1.msra.mxu0 0.0
    %1943 = vmatprep.subr.mxu0 0.0
    %1944 = vmatpush1.msra.mxu0 0.0
    %1945 = vmatprep.subr.mxu0 0.0
    %1946 = vmatpush1.msra.mxu0 0.0
    %1947 = vmatprep.subr.mxu0 0.0
    %1948 = vmatpush1.msra.mxu0 0.0
    %1949 = vmatprep.subr.mxu0 0.0
    %1950 = vmatpush1.msra.mxu0 0.0
    %1951 = vmatprep.subr.mxu0 0.0
    %1952 = vmatpush1.msra.mxu0 0.0
    %1953 = vmatprep.subr.mxu0 0.0
    %1954 = vmatpush1.msra.mxu0 0.0
    %1955 = vmatprep.subr.mxu0 0.0
    %1956 = vmatpush1.msra.mxu0 0.0
    %1957 = vmatprep.subr.mxu0 0.0
    %1958 = vmatpush1.msra.mxu0 0.0
    %1959 = vmatprep.subr.mxu0 0.0
    %1960 = vmatpush1.msra.mxu0 0.0
    %1961 = vmatprep.subr.mxu0 0.0
    %1962 = vmatpush1.msra.mxu0 0.0
    %1963 = vmatprep.subr.mxu0 0.0
    %1964 = vmatpush1.msra.mxu0 0.0
    %1965 = vmatprep.subr.mxu0 0.0
    %1966 = vmatpush1.msra.mxu0 0.0
    %1967 = vmatprep.subr.mxu0 0.0
    %1968 = vmatpush1.msra.mxu0 0.0
    %1969 = vmatprep.mubr.f32.mxu0 0.0
    %v1970 = vand.u32 %v40, 4294901760
    %v1971 = vsub.f32 %v40, %v1970
    %1972 = vmatmul.mubr.f32.gmra.mrb[0].mxu0 %v1971
    %v1973 = vpop.f32.mrb[0].mxu0
    %v1974 = vadd.f32 %v1780, %v1973
    %v1975 = vpop.f32.mrb[0].mxu0
    %1976 = vmatprep.mubr.f32.mxu0 0.0
    %v1977 = vand.u32 %v41, 4294901760
    %v1978 = vsub.f32 %v41, %v1977
    %1979 = vmatmul.mubr.f32.gmra.mrb[0].mxu0 %v1978
    %v1980 = vpop.f32.mrb[0].mxu0
    %v1981 = vadd.f32 %v1786, %v1980
    %v1982 = vpop.f32.mrb[0].mxu0
    %1983 = vmatprep.mubr.f32.mxu0 0.0
    %v1984 = vand.u32 %v42, 4294901760
    %v1985 = vsub.f32 %v42, %v1984
    %1986 = vmatmul.mubr.f32.gmra.mrb[0].mxu0 %v1985
    %v1987 = vpop.f32.mrb[0].mxu0
    %v1988 = vadd.f32 %v1792, %v1987
    %v1989 = vpop.f32.mrb[0].mxu0
    %1990 = vmatprep.mubr.f32.mxu0 0.0
    %v1991 = vand.u32 %v43, 4294901760
    %v1992 = vsub.f32 %v43, %v1991
    %1993 = vmatmul.mubr.f32.gmra.mrb[0].mxu0 %v1992
    %v1994 = vpop.f32.mrb[0].mxu0
    %v1995 = vadd.f32 %v1798, %v1994
    %v1996 = vpop.f32.mrb[0].mxu0
    %1997 = vmatprep.mubr.f32.mxu0 0.0
    %v1998 = vand.u32 %v44, 4294901760
    %v1999 = vsub.f32 %v44, %v1998
    %2000 = vmatmul.mubr.f32.gmra.mrb[0].mxu0 %v1999
    %v2001 = vpop.f32.mrb[0].mxu0
    %v2002 = vadd.f32 %v1804, %v2001
    %v2003 = vpop.f32.mrb[0].mxu0
    %2004 = vmatprep.mubr.f32.mxu0 0.0
    %v2005 = vand.u32 %v45, 4294901760
    %v2006 = vsub.f32 %v45, %v2005
    %2007 = vmatmul.mubr.f32.gmra.mrb[0].mxu0 %v2006
    %v2008 = vpop.f32.mrb[0].mxu0
    %v2009 = vadd.f32 %v1810, %v2008
    %v2010 = vpop.f32.mrb[0].mxu0
    %2011 = vmatprep.mubr.f32.mxu0 0.0
    %v2012 = vand.u32 %v46, 4294901760
    %v2013 = vsub.f32 %v46, %v2012
    %2014 = vmatmul.mubr.f32.gmra.mrb[0].mxu0 %v2013
    %v2015 = vpop.f32.mrb[0].mxu0
    %v2016 = vadd.f32 %v1816, %v2015
    %v2017 = vpop.f32.mrb[0].mxu0
    %2018 = vmatprep.mubr.f32.mxu0 0.0
    %v2019 = vand.u32 %v47, 4294901760
    %v2020 = vsub.f32 %v47, %v2019
    %2021 = vmatmul.mubr.f32.gmra.mrb[0].mxu0 %v2020
    %v2022 = vpop.f32.mrb[0].mxu0
    %v2023 = vadd.f32 %v1822, %v2022
    %v2024 = vpop.f32.mrb[0].mxu0
    %2025 = vmatprep.mubr.f32.mxu0 0.0
    %v2026 = vand.u32 %v48, 4294901760
    %v2027 = vsub.f32 %v48, %v2026
    %2028 = vmatmul.mubr.f32.gmra.mrb[0].mxu0 %v2027
    %v2029 = vpop.f32.mrb[0].mxu0
    %v2030 = vadd.f32 %v1828, %v2029
    %v2031 = vpop.f32.mrb[0].mxu0
    %2032 = vmatprep.mubr.f32.mxu0 0.0
    %v2033 = vand.u32 %v49, 4294901760
    %v2034 = vsub.f32 %v49, %v2033
    %2035 = vmatmul.mubr.f32.gmra.mrb[0].mxu0 %v2034
    %v2036 = vpop.f32.mrb[0].mxu0
    %v2037 = vadd.f32 %v1834, %v2036
    %v2038 = vpop.f32.mrb[0].mxu0
    %2039 = vmatprep.mubr.f32.mxu0 0.0
    %v2040 = vand.u32 %v50, 4294901760
    %v2041 = vsub.f32 %v50, %v2040
    %2042 = vmatmul.mubr.f32.gmra.mrb[0].mxu0 %v2041
    %v2043 = vpop.f32.mrb[0].mxu0
    %v2044 = vadd.f32 %v1840, %v2043
    %v2045 = vpop.f32.mrb[0].mxu0
    %2046 = vmatprep.mubr.f32.mxu0 0.0
    %v2047 = vand.u32 %v51, 4294901760
    %v2048 = vsub.f32 %v51, %v2047
    %2049 = vmatmul.mubr.f32.gmra.mrb[0].mxu0 %v2048
    %v2050 = vpop.f32.mrb[0].mxu0
    %v2051 = vadd.f32 %v1846, %v2050
    %v2052 = vpop.f32.mrb[0].mxu0
    %2053 = vmatprep.mubr.f32.mxu0 0.0
    %v2054 = vand.u32 %v52, 4294901760
    %v2055 = vsub.f32 %v52, %v2054
    %2056 = vmatmul.mubr.f32.gmra.mrb[0].mxu0 %v2055
    %v2057 = vpop.f32.mrb[0].mxu0
    %v2058 = vadd.f32 %v1852, %v2057
    %v2059 = vpop.f32.mrb[0].mxu0
    %2060 = vmatprep.mubr.f32.mxu0 0.0
    %v2061 = vand.u32 %v53, 4294901760
    %v2062 = vsub.f32 %v53, %v2061
    %2063 = vmatmul.mubr.f32.gmra.mrb[0].mxu0 %v2062
    %v2064 = vpop.f32.mrb[0].mxu0
    %v2065 = vadd.f32 %v1858, %v2064
    %v2066 = vpop.f32.mrb[0].mxu0
    %2067 = vmatprep.mubr.f32.mxu0 0.0
    %v2068 = vand.u32 %v54, 4294901760
    %v2069 = vsub.f32 %v54, %v2068
    %2070 = vmatmul.mubr.f32.gmra.mrb[0].mxu0 %v2069
    %v2071 = vpop.f32.mrb[0].mxu0
    %v2072 = vadd.f32 %v1864, %v2071
    %v2073 = vpop.f32.mrb[0].mxu0
    %2074 = vmatprep.mubr.f32.mxu0 0.0
    %v2075 = vand.u32 %v55, 4294901760
    %v2076 = vsub.f32 %v55, %v2075
    %2077 = vmatmul.mubr.f32.gmra.mrb[0].mxu0 %v2076
    %v2078 = vpop.f32.mrb[0].mxu0
    %v2079 = vadd.f32 %v1870, %v2078
    %v2080 = vpop.f32.mrb[0].mxu0
    %2081 = vdwg.mxu0
    %2082 = vmatprep.subr.mxu0 0.0
    %v2083 = vand.u32 %v1375, 4294901760
    %2084 = vmatpush1.msra.mxu0 %v2083
    %2085 = vmatprep.subr.mxu0 0.0
    %v2086 = vand.u32 %v1376, 4294901760
    %2087 = vmatpush1.msra.mxu0 %v2086
    %2088 = vmatprep.subr.mxu0 0.0
    %v2089 = vand.u32 %v1377, 4294901760
    %2090 = vmatpush1.msra.mxu0 %v2089
    %2091 = vmatprep.subr.mxu0 0.0
    %v2092 = vand.u32 %v1378, 4294901760
    %2093 = vmatpush1.msra.mxu0 %v2092
    %2094 = vmatprep.subr.mxu0 0.0
    %v2095 = vand.u32 %v1379, 4294901760
    %2096 = vmatpush1.msra.mxu0 %v2095
    %2097 = vmatprep.subr.mxu0 0.0
    %v2098 = vand.u32 %v1380, 4294901760
    %2099 = vmatpush1.msra.mxu0 %v2098
    %2100 = vmatprep.subr.mxu0 0.0
    %v2101 = vand.u32 %v1381, 4294901760
    %2102 = vmatpush1.msra.mxu0 %v2101
    %2103 = vmatprep.subr.mxu0 0.0
    %v2104 = vand.u32 %v1382, 4294901760
    %2105 = vmatpush1.msra.mxu0 %v2104
    %2106 = vmatprep.subr.mxu0 0.0
    %v2107 = vand.u32 %v1383, 4294901760
    %2108 = vmatpush1.msra.mxu0 %v2107
    %2109 = vmatprep.subr.mxu0 0.0
    %v2110 = vand.u32 %v1384, 4294901760
    %2111 = vmatpush1.msra.mxu0 %v2110
    %2112 = vmatprep.subr.mxu0 0.0
    %v2113 = vand.u32 %v1385, 4294901760
    %2114 = vmatpush1.msra.mxu0 %v2113
    %2115 = vmatprep.subr.mxu0 0.0
    %v2116 = vand.u32 %v1386, 4294901760
    %2117 = vmatpush1.msra.mxu0 %v2116
    %2118 = vmatprep.subr.mxu0 0.0
    %v2119 = vand.u32 %v1387, 4294901760
    %2120 = vmatpush1.msra.mxu0 %v2119
    %2121 = vmatprep.subr.mxu0 0.0
    %v2122 = vand.u32 %v1388, 4294901760
    %2123 = vmatpush1.msra.mxu0 %v2122
    %2124 = vmatprep.subr.mxu0 0.0
    %v2125 = vand.u32 %v1389, 4294901760
    %2126 = vmatpush1.msra.mxu0 %v2125
    %2127 = vmatprep.subr.mxu0 0.0
    %v2128 = vand.u32 %v1390, 4294901760
    %2129 = vmatpush1.msra.mxu0 %v2128
    %2130 = vmatprep.subr.mxu0 0.0
    %2131 = vmatpush1.msra.mxu0 0.0
    %2132 = vmatprep.subr.mxu0 0.0
    %2133 = vmatpush1.msra.mxu0 0.0
    %2134 = vmatprep.subr.mxu0 0.0
    %2135 = vmatpush1.msra.mxu0 0.0
    %2136 = vmatprep.subr.mxu0 0.0
    %2137 = vmatpush1.msra.mxu0 0.0
    %2138 = vmatprep.subr.mxu0 0.0
    %2139 = vmatpush1.msra.mxu0 0.0
    %2140 = vmatprep.subr.mxu0 0.0
    %2141 = vmatpush1.msra.mxu0 0.0
    %2142 = vmatprep.subr.mxu0 0.0
    %2143 = vmatpush1.msra.mxu0 0.0
    %2144 = vmatprep.subr.mxu0 0.0
    %2145 = vmatpush1.msra.mxu0 0.0
    %2146 = vmatprep.subr.mxu0 0.0
    %2147 = vmatpush1.msra.mxu0 0.0
    %2148 = vmatprep.subr.mxu0 0.0
    %2149 = vmatpush1.msra.mxu0 0.0
    %2150 = vmatprep.subr.mxu0 0.0
    %2151 = vmatpush1.msra.mxu0 0.0
    %2152 = vmatprep.subr.mxu0 0.0
    %2153 = vmatpush1.msra.mxu0 0.0
    %2154 = vmatprep.subr.mxu0 0.0
    %2155 = vmatpush1.msra.mxu0 0.0
    %2156 = vmatprep.subr.mxu0 0.0
    %2157 = vmatpush1.msra.mxu0 0.0
    %2158 = vmatprep.subr.mxu0 0.0
    %2159 = vmatpush1.msra.mxu0 0.0
    %2160 = vmatprep.subr.mxu0 0.0
    %2161 = vmatpush1.msra.mxu0 0.0
    %2162 = vmatprep.mubr.f32.mxu0 0.0
    %v2163 = vand.u32 %v40, 4294901760
    %v2164 = vsub.f32 %v40, %v2163
    %v2165 = vand.u32 %v2164, 4294901760
    %2166 = vmatmul.mubr.f32.gmra.mrb[0].mxu0 %v2165
    %v2167 = vpop.f32.mrb[0].mxu0
    %v2168 = vadd.f32 %v1974, %v2167
    %v2169 = vpop.f32.mrb[0].mxu0
    %2170 = vmatprep.mubr.f32.mxu0 0.0
    %v2171 = vand.u32 %v41, 4294901760
    %v2172 = vsub.f32 %v41, %v2171
    %v2173 = vand.u32 %v2172, 4294901760
    %2174 = vmatmul.mubr.f32.gmra.mrb[0].mxu0 %v2173
    %v2175 = vpop.f32.mrb[0].mxu0
    %v2176 = vadd.f32 %v1981, %v2175
    %v2177 = vpop.f32.mrb[0].mxu0
    %2178 = vmatprep.mubr.f32.mxu0 0.0
    %v2179 = vand.u32 %v42, 4294901760
    %v2180 = vsub.f32 %v42, %v2179
    %v2181 = vand.u32 %v2180, 4294901760
    %2182 = vmatmul.mubr.f32.gmra.mrb[0].mxu0 %v2181
    %v2183 = vpop.f32.mrb[0].mxu0
    %v2184 = vadd.f32 %v1988, %v2183
    %v2185 = vpop.f32.mrb[0].mxu0
    %2186 = vmatprep.mubr.f32.mxu0 0.0
    %v2187 = vand.u32 %v43, 4294901760
    %v2188 = vsub.f32 %v43, %v2187
    %v2189 = vand.u32 %v2188, 4294901760
    %2190 = vmatmul.mubr.f32.gmra.mrb[0].mxu0 %v2189
    %v2191 = vpop.f32.mrb[0].mxu0
    %v2192 = vadd.f32 %v1995, %v2191
    %v2193 = vpop.f32.mrb[0].mxu0
    %2194 = vmatprep.mubr.f32.mxu0 0.0
    %v2195 = vand.u32 %v44, 4294901760
    %v2196 = vsub.f32 %v44, %v2195
    %v2197 = vand.u32 %v2196, 4294901760
    %2198 = vmatmul.mubr.f32.gmra.mrb[0].mxu0 %v2197
    %v2199 = vpop.f32.mrb[0].mxu0
    %v2200 = vadd.f32 %v2002, %v2199
    %v2201 = vpop.f32.mrb[0].mxu0
    %2202 = vmatprep.mubr.f32.mxu0 0.0
    %v2203 = vand.u32 %v45, 4294901760
    %v2204 = vsub.f32 %v45, %v2203
    %v2205 = vand.u32 %v2204, 4294901760
    %2206 = vmatmul.mubr.f32.gmra.mrb[0].mxu0 %v2205
    %v2207 = vpop.f32.mrb[0].mxu0
    %v2208 = vadd.f32 %v2009, %v2207
    %v2209 = vpop.f32.mrb[0].mxu0
    %2210 = vmatprep.mubr.f32.mxu0 0.0
    %v2211 = vand.u32 %v46, 4294901760
    %v2212 = vsub.f32 %v46, %v2211
    %v2213 = vand.u32 %v2212, 4294901760
    %2214 = vmatmul.mubr.f32.gmra.mrb[0].mxu0 %v2213
    %v2215 = vpop.f32.mrb[0].mxu0
    %v2216 = vadd.f32 %v2016, %v2215
    %v2217 = vpop.f32.mrb[0].mxu0
    %2218 = vmatprep.mubr.f32.mxu0 0.0
    %v2219 = vand.u32 %v47, 4294901760
    %v2220 = vsub.f32 %v47, %v2219
    %v2221 = vand.u32 %v2220, 4294901760
    %2222 = vmatmul.mubr.f32.gmra.mrb[0].mxu0 %v2221
    %v2223 = vpop.f32.mrb[0].mxu0
    %v2224 = vadd.f32 %v2023, %v2223
    %v2225 = vpop.f32.mrb[0].mxu0
    %2226 = vmatprep.mubr.f32.mxu0 0.0
    %v2227 = vand.u32 %v48, 4294901760
    %v2228 = vsub.f32 %v48, %v2227
    %v2229 = vand.u32 %v2228, 4294901760
    %2230 = vmatmul.mubr.f32.gmra.mrb[0].mxu0 %v2229
    %v2231 = vpop.f32.mrb[0].mxu0
    %v2232 = vadd.f32 %v2030, %v2231
    %v2233 = vpop.f32.mrb[0].mxu0
    %2234 = vmatprep.mubr.f32.mxu0 0.0
    %v2235 = vand.u32 %v49, 4294901760
    %v2236 = vsub.f32 %v49, %v2235
    %v2237 = vand.u32 %v2236, 4294901760
    %2238 = vmatmul.mubr.f32.gmra.mrb[0].mxu0 %v2237
    %v2239 = vpop.f32.mrb[0].mxu0
    %v2240 = vadd.f32 %v2037, %v2239
    %v2241 = vpop.f32.mrb[0].mxu0
    %2242 = vmatprep.mubr.f32.mxu0 0.0
    %v2243 = vand.u32 %v50, 4294901760
    %v2244 = vsub.f32 %v50, %v2243
    %v2245 = vand.u32 %v2244, 4294901760
    %2246 = vmatmul.mubr.f32.gmra.mrb[0].mxu0 %v2245
    %v2247 = vpop.f32.mrb[0].mxu0
    %v2248 = vadd.f32 %v2044, %v2247
    %v2249 = vpop.f32.mrb[0].mxu0
    %2250 = vmatprep.mubr.f32.mxu0 0.0
    %v2251 = vand.u32 %v51, 4294901760
    %v2252 = vsub.f32 %v51, %v2251
    %v2253 = vand.u32 %v2252, 4294901760
    %2254 = vmatmul.mubr.f32.gmra.mrb[0].mxu0 %v2253
    %v2255 = vpop.f32.mrb[0].mxu0
    %v2256 = vadd.f32 %v2051, %v2255
    %v2257 = vpop.f32.mrb[0].mxu0
    %2258 = vmatprep.mubr.f32.mxu0 0.0
    %v2259 = vand.u32 %v52, 4294901760
    %v2260 = vsub.f32 %v52, %v2259
    %v2261 = vand.u32 %v2260, 4294901760
    %2262 = vmatmul.mubr.f32.gmra.mrb[0].mxu0 %v2261
    %v2263 = vpop.f32.mrb[0].mxu0
    %v2264 = vadd.f32 %v2058, %v2263
    %v2265 = vpop.f32.mrb[0].mxu0
    %2266 = vmatprep.mubr.f32.mxu0 0.0
    %v2267 = vand.u32 %v53, 4294901760
    %v2268 = vsub.f32 %v53, %v2267
    %v2269 = vand.u32 %v2268, 4294901760
    %2270 = vmatmul.mubr.f32.gmra.mrb[0].mxu0 %v2269
    %v2271 = vpop.f32.mrb[0].mxu0
    %v2272 = vadd.f32 %v2065, %v2271
    %v2273 = vpop.f32.mrb[0].mxu0
    %2274 = vmatprep.mubr.f32.mxu0 0.0
    %v2275 = vand.u32 %v54, 4294901760
    %v2276 = vsub.f32 %v54, %v2275
    %v2277 = vand.u32 %v2276, 4294901760
    %2278 = vmatmul.mubr.f32.gmra.mrb[0].mxu0 %v2277
    %v2279 = vpop.f32.mrb[0].mxu0
    %v2280 = vadd.f32 %v2072, %v2279
    %v2281 = vpop.f32.mrb[0].mxu0
    %2282 = vmatprep.mubr.f32.mxu0 0.0
    %v2283 = vand.u32 %v55, 4294901760
    %v2284 = vsub.f32 %v55, %v2283
    %v2285 = vand.u32 %v2284, 4294901760
    %2286 = vmatmul.mubr.f32.gmra.mrb[0].mxu0 %v2285
    %v2287 = vpop.f32.mrb[0].mxu0
    %v2288 = vadd.f32 %v2079, %v2287
    %v2289 = vpop.f32.mrb[0].mxu0
    %2290 = vdwg.mxu0
    %2291 = vmatprep.subr.mxu0 0.0
    %v2292 = vand.u32 %v1375, 4294901760
    %v2293 = vsub.f32 %v1375, %v2292
    %v2294 = vand.u32 %v2293, 4294901760
    %2295 = vmatpush1.msra.mxu0 %v2294
    %2296 = vmatprep.subr.mxu0 0.0
    %v2297 = vand.u32 %v1376, 4294901760
    %v2298 = vsub.f32 %v1376, %v2297
    %v2299 = vand.u32 %v2298, 4294901760
    %2300 = vmatpush1.msra.mxu0 %v2299
    %2301 = vmatprep.subr.mxu0 0.0
    %v2302 = vand.u32 %v1377, 4294901760
    %v2303 = vsub.f32 %v1377, %v2302
    %v2304 = vand.u32 %v2303, 4294901760
    %2305 = vmatpush1.msra.mxu0 %v2304
    %2306 = vmatprep.subr.mxu0 0.0
    %v2307 = vand.u32 %v1378, 4294901760
    %v2308 = vsub.f32 %v1378, %v2307
    %v2309 = vand.u32 %v2308, 4294901760
    %2310 = vmatpush1.msra.mxu0 %v2309
    %2311 = vmatprep.subr.mxu0 0.0
    %v2312 = vand.u32 %v1379, 4294901760
    %v2313 = vsub.f32 %v1379, %v2312
    %v2314 = vand.u32 %v2313, 4294901760
    %2315 = vmatpush1.msra.mxu0 %v2314
    %2316 = vmatprep.subr.mxu0 0.0
    %v2317 = vand.u32 %v1380, 4294901760
    %v2318 = vsub.f32 %v1380, %v2317
    %v2319 = vand.u32 %v2318, 4294901760
    %2320 = vmatpush1.msra.mxu0 %v2319
    %2321 = vmatprep.subr.mxu0 0.0
    %v2322 = vand.u32 %v1381, 4294901760
    %v2323 = vsub.f32 %v1381, %v2322
    %v2324 = vand.u32 %v2323, 4294901760
    %2325 = vmatpush1.msra.mxu0 %v2324
    %2326 = vmatprep.subr.mxu0 0.0
    %v2327 = vand.u32 %v1382, 4294901760
    %v2328 = vsub.f32 %v1382, %v2327
    %v2329 = vand.u32 %v2328, 4294901760
    %2330 = vmatpush1.msra.mxu0 %v2329
    %2331 = vmatprep.subr.mxu0 0.0
    %v2332 = vand.u32 %v1383, 4294901760
    %v2333 = vsub.f32 %v1383, %v2332
    %v2334 = vand.u32 %v2333, 4294901760
    %2335 = vmatpush1.msra.mxu0 %v2334
    %2336 = vmatprep.subr.mxu0 0.0
    %v2337 = vand.u32 %v1384, 4294901760
    %v2338 = vsub.f32 %v1384, %v2337
    %v2339 = vand.u32 %v2338, 4294901760
    %2340 = vmatpush1.msra.mxu0 %v2339
    %2341 = vmatprep.subr.mxu0 0.0
    %v2342 = vand.u32 %v1385, 4294901760
    %v2343 = vsub.f32 %v1385, %v2342
    %v2344 = vand.u32 %v2343, 4294901760
    %2345 = vmatpush1.msra.mxu0 %v2344
    %2346 = vmatprep.subr.mxu0 0.0
    %v2347 = vand.u32 %v1386, 4294901760
    %v2348 = vsub.f32 %v1386, %v2347
    %v2349 = vand.u32 %v2348, 4294901760
    %2350 = vmatpush1.msra.mxu0 %v2349
    %2351 = vmatprep.subr.mxu0 0.0
    %v2352 = vand.u32 %v1387, 4294901760
    %v2353 = vsub.f32 %v1387, %v2352
    %v2354 = vand.u32 %v2353, 4294901760
    %2355 = vmatpush1.msra.mxu0 %v2354
    %2356 = vmatprep.subr.mxu0 0.0
    %v2357 = vand.u32 %v1388, 4294901760
    %v2358 = vsub.f32 %v1388, %v2357
    %v2359 = vand.u32 %v2358, 4294901760
    %2360 = vmatpush1.msra.mxu0 %v2359
    %2361 = vmatprep.subr.mxu0 0.0
    %v2362 = vand.u32 %v1389, 4294901760
    %v2363 = vsub.f32 %v1389, %v2362
    %v2364 = vand.u32 %v2363, 4294901760
    %2365 = vmatpush1.msra.mxu0 %v2364
    %2366 = vmatprep.subr.mxu0 0.0
    %v2367 = vand.u32 %v1390, 4294901760
    %v2368 = vsub.f32 %v1390, %v2367
    %v2369 = vand.u32 %v2368, 4294901760
    %2370 = vmatpush1.msra.mxu0 %v2369
    %2371 = vmatprep.subr.mxu0 0.0
    %2372 = vmatpush1.msra.mxu0 0.0
    %2373 = vmatprep.subr.mxu0 0.0
    %2374 = vmatpush1.msra.mxu0 0.0
    %2375 = vmatprep.subr.mxu0 0.0
    %2376 = vmatpush1.msra.mxu0 0.0
    %2377 = vmatprep.subr.mxu0 0.0
    %2378 = vmatpush1.msra.mxu0 0.0
    %2379 = vmatprep.subr.mxu0 0.0
    %2380 = vmatpush1.msra.mxu0 0.0
    %2381 = vmatprep.subr.mxu0 0.0
    %2382 = vmatpush1.msra.mxu0 0.0
    %2383 = vmatprep.subr.mxu0 0.0
    %2384 = vmatpush1.msra.mxu0 0.0
    %2385 = vmatprep.subr.mxu0 0.0
    %2386 = vmatpush1.msra.mxu0 0.0
    %2387 = vmatprep.subr.mxu0 0.0
    %2388 = vmatpush1.msra.mxu0 0.0
    %2389 = vmatprep.subr.mxu0 0.0
    %2390 = vmatpush1.msra.mxu0 0.0
    %2391 = vmatprep.subr.mxu0 0.0
    %2392 = vmatpush1.msra.mxu0 0.0
    %2393 = vmatprep.subr.mxu0 0.0
    %2394 = vmatpush1.msra.mxu0 0.0
    %2395 = vmatprep.subr.mxu0 0.0
    %2396 = vmatpush1.msra.mxu0 0.0
    %2397 = vmatprep.subr.mxu0 0.0
    %2398 = vmatpush1.msra.mxu0 0.0
    %2399 = vmatprep.subr.mxu0 0.0
    %2400 = vmatpush1.msra.mxu0 0.0
    %2401 = vmatprep.subr.mxu0 0.0
    %2402 = vmatpush1.msra.mxu0 0.0
    %2403 = vmatprep.mubr.f32.mxu0 0.0
    %v2404 = vand.u32 %v40, 4294901760
    %2405 = vmatmul.mubr.f32.gmra.mrb[0].mxu0 %v2404
    %v2406 = vpop.f32.mrb[0].mxu0
    %v2407 = vadd.f32 %v2168, %v2406
    %v2408 = vpop.f32.mrb[0].mxu0
    %2409 = vmatprep.mubr.f32.mxu0 0.0
    %v2410 = vand.u32 %v41, 4294901760
    %2411 = vmatmul.mubr.f32.gmra.mrb[0].mxu0 %v2410
    %v2412 = vpop.f32.mrb[0].mxu0
    %v2413 = vadd.f32 %v2176, %v2412
    %v2414 = vpop.f32.mrb[0].mxu0
    %2415 = vmatprep.mubr.f32.mxu0 0.0
    %v2416 = vand.u32 %v42, 4294901760
    %2417 = vmatmul.mubr.f32.gmra.mrb[0].mxu0 %v2416
    %v2418 = vpop.f32.mrb[0].mxu0
    %v2419 = vadd.f32 %v2184, %v2418
    %v2420 = vpop.f32.mrb[0].mxu0
    %2421 = vmatprep.mubr.f32.mxu0 0.0
    %v2422 = vand.u32 %v43, 4294901760
    %2423 = vmatmul.mubr.f32.gmra.mrb[0].mxu0 %v2422
    %v2424 = vpop.f32.mrb[0].mxu0
    %v2425 = vadd.f32 %v2192, %v2424
    %v2426 = vpop.f32.mrb[0].mxu0
    %2427 = vmatprep.mubr.f32.mxu0 0.0
    %v2428 = vand.u32 %v44, 4294901760
    %2429 = vmatmul.mubr.f32.gmra.mrb[0].mxu0 %v2428
    %v2430 = vpop.f32.mrb[0].mxu0
    %v2431 = vadd.f32 %v2200, %v2430
    %v2432 = vpop.f32.mrb[0].mxu0
    %2433 = vmatprep.mubr.f32.mxu0 0.0
    %v2434 = vand.u32 %v45, 4294901760
    %2435 = vmatmul.mubr.f32.gmra.mrb[0].mxu0 %v2434
    %v2436 = vpop.f32.mrb[0].mxu0
    %v2437 = vadd.f32 %v2208, %v2436
    %v2438 = vpop.f32.mrb[0].mxu0
    %2439 = vmatprep.mubr.f32.mxu0 0.0
    %v2440 = vand.u32 %v46, 4294901760
    %2441 = vmatmul.mubr.f32.gmra.mrb[0].mxu0 %v2440
    %v2442 = vpop.f32.mrb[0].mxu0
    %v2443 = vadd.f32 %v2216, %v2442
    %v2444 = vpop.f32.mrb[0].mxu0
    %2445 = vmatprep.mubr.f32.mxu0 0.0
    %v2446 = vand.u32 %v47, 4294901760
    %2447 = vmatmul.mubr.f32.gmra.mrb[0].mxu0 %v2446
    %v2448 = vpop.f32.mrb[0].mxu0
    %v2449 = vadd.f32 %v2224, %v2448
    %v2450 = vpop.f32.mrb[0].mxu0
    %2451 = vmatprep.mubr.f32.mxu0 0.0
    %v2452 = vand.u32 %v48, 4294901760
    %2453 = vmatmul.mubr.f32.gmra.mrb[0].mxu0 %v2452
    %v2454 = vpop.f32.mrb[0].mxu0
    %v2455 = vadd.f32 %v2232, %v2454
    %v2456 = vpop.f32.mrb[0].mxu0
    %2457 = vmatprep.mubr.f32.mxu0 0.0
    %v2458 = vand.u32 %v49, 4294901760
    %2459 = vmatmul.mubr.f32.gmra.mrb[0].mxu0 %v2458
    %v2460 = vpop.f32.mrb[0].mxu0
    %v2461 = vadd.f32 %v2240, %v2460
    %v2462 = vpop.f32.mrb[0].mxu0
    %2463 = vmatprep.mubr.f32.mxu0 0.0
    %v2464 = vand.u32 %v50, 4294901760
    %2465 = vmatmul.mubr.f32.gmra.mrb[0].mxu0 %v2464
    %v2466 = vpop.f32.mrb[0].mxu0
    %v2467 = vadd.f32 %v2248, %v2466
    %v2468 = vpop.f32.mrb[0].mxu0
    %2469 = vmatprep.mubr.f32.mxu0 0.0
    %v2470 = vand.u32 %v51, 4294901760
    %2471 = vmatmul.mubr.f32.gmra.mrb[0].mxu0 %v2470
    %v2472 = vpop.f32.mrb[0].mxu0
    %v2473 = vadd.f32 %v2256, %v2472
    %v2474 = vpop.f32.mrb[0].mxu0
    %2475 = vmatprep.mubr.f32.mxu0 0.0
    %v2476 = vand.u32 %v52, 4294901760
    %2477 = vmatmul.mubr.f32.gmra.mrb[0].mxu0 %v2476
    %v2478 = vpop.f32.mrb[0].mxu0
    %v2479 = vadd.f32 %v2264, %v2478
    %v2480 = vpop.f32.mrb[0].mxu0
    %2481 = vmatprep.mubr.f32.mxu0 0.0
    %v2482 = vand.u32 %v53, 4294901760
    %2483 = vmatmul.mubr.f32.gmra.mrb[0].mxu0 %v2482
    %v2484 = vpop.f32.mrb[0].mxu0
    %v2485 = vadd.f32 %v2272, %v2484
    %v2486 = vpop.f32.mrb[0].mxu0
    %2487 = vmatprep.mubr.f32.mxu0 0.0
    %v2488 = vand.u32 %v54, 4294901760
    %2489 = vmatmul.mubr.f32.gmra.mrb[0].mxu0 %v2488
    %v2490 = vpop.f32.mrb[0].mxu0
    %v2491 = vadd.f32 %v2280, %v2490
    %v2492 = vpop.f32.mrb[0].mxu0
    %2493 = vmatprep.mubr.f32.mxu0 0.0
    %v2494 = vand.u32 %v55, 4294901760
    %2495 = vmatmul.mubr.f32.gmra.mrb[0].mxu0 %v2494
    %v2496 = vpop.f32.mrb[0].mxu0
    %v2497 = vadd.f32 %v2288, %v2496
    %v2498 = vpop.f32.mrb[0].mxu0
    %2499 = vdwg.mxu0
    %2500 = vmatprep.subr.mxu0 0.0
    %v2501 = vand.u32 %v1375, 4294901760
    %2502 = vmatpush1.msra.mxu0 %v2501
    %2503 = vmatprep.subr.mxu0 0.0
    %v2504 = vand.u32 %v1376, 4294901760
    %2505 = vmatpush1.msra.mxu0 %v2504
    %2506 = vmatprep.subr.mxu0 0.0
    %v2507 = vand.u32 %v1377, 4294901760
    %2508 = vmatpush1.msra.mxu0 %v2507
    %2509 = vmatprep.subr.mxu0 0.0
    %v2510 = vand.u32 %v1378, 4294901760
    %2511 = vmatpush1.msra.mxu0 %v2510
    %2512 = vmatprep.subr.mxu0 0.0
    %v2513 = vand.u32 %v1379, 4294901760
    %2514 = vmatpush1.msra.mxu0 %v2513
    %2515 = vmatprep.subr.mxu0 0.0
    %v2516 = vand.u32 %v1380, 4294901760
    %2517 = vmatpush1.msra.mxu0 %v2516
    %2518 = vmatprep.subr.mxu0 0.0
    %v2519 = vand.u32 %v1381, 4294901760
    %2520 = vmatpush1.msra.mxu0 %v2519
    %2521 = vmatprep.subr.mxu0 0.0
    %v2522 = vand.u32 %v1382, 4294901760
    %2523 = vmatpush1.msra.mxu0 %v2522
    %2524 = vmatprep.subr.mxu0 0.0
    %v2525 = vand.u32 %v1383, 4294901760
    %2526 = vmatpush1.msra.mxu0 %v2525
    %2527 = vmatprep.subr.mxu0 0.0
    %v2528 = vand.u32 %v1384, 4294901760
    %2529 = vmatpush1.msra.mxu0 %v2528
    %2530 = vmatprep.subr.mxu0 0.0
    %v2531 = vand.u32 %v1385, 4294901760
    %2532 = vmatpush1.msra.mxu0 %v2531
    %2533 = vmatprep.subr.mxu0 0.0
    %v2534 = vand.u32 %v1386, 4294901760
    %2535 = vmatpush1.msra.mxu0 %v2534
    %2536 = vmatprep.subr.mxu0 0.0
    %v2537 = vand.u32 %v1387, 4294901760
    %2538 = vmatpush1.msra.mxu0 %v2537
    %2539 = vmatprep.subr.mxu0 0.0
    %v2540 = vand.u32 %v1388, 4294901760
    %2541 = vmatpush1.msra.mxu0 %v2540
    %2542 = vmatprep.subr.mxu0 0.0
    %v2543 = vand.u32 %v1389, 4294901760
    %2544 = vmatpush1.msra.mxu0 %v2543
    %2545 = vmatprep.subr.mxu0 0.0
    %v2546 = vand.u32 %v1390, 4294901760
    %2547 = vmatpush1.msra.mxu0 %v2546
    %2548 = vmatprep.subr.mxu0 0.0
    %2549 = vmatpush1.msra.mxu0 0.0
    %2550 = vmatprep.subr.mxu0 0.0
    %2551 = vmatpush1.msra.mxu0 0.0
    %2552 = vmatprep.subr.mxu0 0.0
    %2553 = vmatpush1.msra.mxu0 0.0
    %2554 = vmatprep.subr.mxu0 0.0
    %2555 = vmatpush1.msra.mxu0 0.0
    %2556 = vmatprep.subr.mxu0 0.0
    %2557 = vmatpush1.msra.mxu0 0.0
    %2558 = vmatprep.subr.mxu0 0.0
    %2559 = vmatpush1.msra.mxu0 0.0
    %2560 = vmatprep.subr.mxu0 0.0
    %2561 = vmatpush1.msra.mxu0 0.0
    %2562 = vmatprep.subr.mxu0 0.0
    %2563 = vmatpush1.msra.mxu0 0.0
    %2564 = vmatprep.subr.mxu0 0.0
    %2565 = vmatpush1.msra.mxu0 0.0
    %2566 = vmatprep.subr.mxu0 0.0
    %2567 = vmatpush1.msra.mxu0 0.0
    %2568 = vmatprep.subr.mxu0 0.0
    %2569 = vmatpush1.msra.mxu0 0.0
    %2570 = vmatprep.subr.mxu0 0.0
    %2571 = vmatpush1.msra.mxu0 0.0
    %2572 = vmatprep.subr.mxu0 0.0
    %2573 = vmatpush1.msra.mxu0 0.0
    %2574 = vmatprep.subr.mxu0 0.0
    %2575 = vmatpush1.msra.mxu0 0.0
    %2576 = vmatprep.subr.mxu0 0.0
    %2577 = vmatpush1.msra.mxu0 0.0
    %2578 = vmatprep.subr.mxu0 0.0
    %2579 = vmatpush1.msra.mxu0 0.0
    %2580 = vmatprep.mubr.f32.mxu0 0.0
    %v2581 = vand.u32 %v40, 4294901760
    %2582 = vmatmul.mubr.f32.gmra.mrb[0].mxu0 %v2581
    %v2583 = vpop.f32.mrb[0].mxu0
    %v2584 = vadd.f32 %v2407, %v2583
    %v2585 = vpop.f32.mrb[0].mxu0
    %2586 = vmatprep.mubr.f32.mxu0 0.0
    %v2587 = vand.u32 %v41, 4294901760
    %2588 = vmatmul.mubr.f32.gmra.mrb[0].mxu0 %v2587
    %v2589 = vpop.f32.mrb[0].mxu0
    %v2590 = vadd.f32 %v2413, %v2589
    %v2591 = vpop.f32.mrb[0].mxu0
    %2592 = vmatprep.mubr.f32.mxu0 0.0
    %v2593 = vand.u32 %v42, 4294901760
    %2594 = vmatmul.mubr.f32.gmra.mrb[0].mxu0 %v2593
    %v2595 = vpop.f32.mrb[0].mxu0
    %v2596 = vadd.f32 %v2419, %v2595
    %v2597 = vpop.f32.mrb[0].mxu0
    %2598 = vmatprep.mubr.f32.mxu0 0.0
    %v2599 = vand.u32 %v43, 4294901760
    %2600 = vmatmul.mubr.f32.gmra.mrb[0].mxu0 %v2599
    %v2601 = vpop.f32.mrb[0].mxu0
    %v2602 = vadd.f32 %v2425, %v2601
    %v2603 = vpop.f32.mrb[0].mxu0
    %2604 = vmatprep.mubr.f32.mxu0 0.0
    %v2605 = vand.u32 %v44, 4294901760
    %2606 = vmatmul.mubr.f32.gmra.mrb[0].mxu0 %v2605
    %v2607 = vpop.f32.mrb[0].mxu0
    %v2608 = vadd.f32 %v2431, %v2607
    %v2609 = vpop.f32.mrb[0].mxu0
    %2610 = vmatprep.mubr.f32.mxu0 0.0
    %v2611 = vand.u32 %v45, 4294901760
    %2612 = vmatmul.mubr.f32.gmra.mrb[0].mxu0 %v2611
    %v2613 = vpop.f32.mrb[0].mxu0
    %v2614 = vadd.f32 %v2437, %v2613
    %v2615 = vpop.f32.mrb[0].mxu0
    %2616 = vmatprep.mubr.f32.mxu0 0.0
    %v2617 = vand.u32 %v46, 4294901760
    %2618 = vmatmul.mubr.f32.gmra.mrb[0].mxu0 %v2617
    %v2619 = vpop.f32.mrb[0].mxu0
    %v2620 = vadd.f32 %v2443, %v2619
    %v2621 = vpop.f32.mrb[0].mxu0
    %2622 = vmatprep.mubr.f32.mxu0 0.0
    %v2623 = vand.u32 %v47, 4294901760
    %2624 = vmatmul.mubr.f32.gmra.mrb[0].mxu0 %v2623
    %v2625 = vpop.f32.mrb[0].mxu0
    %v2626 = vadd.f32 %v2449, %v2625
    %v2627 = vpop.f32.mrb[0].mxu0
    %2628 = vmatprep.mubr.f32.mxu0 0.0
    %v2629 = vand.u32 %v48, 4294901760
    %2630 = vmatmul.mubr.f32.gmra.mrb[0].mxu0 %v2629
    %v2631 = vpop.f32.mrb[0].mxu0
    %v2632 = vadd.f32 %v2455, %v2631
    %v2633 = vpop.f32.mrb[0].mxu0
    %2634 = vmatprep.mubr.f32.mxu0 0.0
    %v2635 = vand.u32 %v49, 4294901760
    %2636 = vmatmul.mubr.f32.gmra.mrb[0].mxu0 %v2635
    %v2637 = vpop.f32.mrb[0].mxu0
    %v2638 = vadd.f32 %v2461, %v2637
    %v2639 = vpop.f32.mrb[0].mxu0
    %2640 = vmatprep.mubr.f32.mxu0 0.0
    %v2641 = vand.u32 %v50, 4294901760
    %2642 = vmatmul.mubr.f32.gmra.mrb[0].mxu0 %v2641
    %v2643 = vpop.f32.mrb[0].mxu0
    %v2644 = vadd.f32 %v2467, %v2643
    %v2645 = vpop.f32.mrb[0].mxu0
    %2646 = vmatprep.mubr.f32.mxu0 0.0
    %v2647 = vand.u32 %v51, 4294901760
    %2648 = vmatmul.mubr.f32.gmra.mrb[0].mxu0 %v2647
    %v2649 = vpop.f32.mrb[0].mxu0
    %v2650 = vadd.f32 %v2473, %v2649
    %v2651 = vpop.f32.mrb[0].mxu0
    %2652 = vmatprep.mubr.f32.mxu0 0.0
    %v2653 = vand.u32 %v52, 4294901760
    %2654 = vmatmul.mubr.f32.gmra.mrb[0].mxu0 %v2653
    %v2655 = vpop.f32.mrb[0].mxu0
    %v2656 = vadd.f32 %v2479, %v2655
    %v2657 = vpop.f32.mrb[0].mxu0
    %2658 = vmatprep.mubr.f32.mxu0 0.0
    %v2659 = vand.u32 %v53, 4294901760
    %2660 = vmatmul.mubr.f32.gmra.mrb[0].mxu0 %v2659
    %v2661 = vpop.f32.mrb[0].mxu0
    %v2662 = vadd.f32 %v2485, %v2661
    %v2663 = vpop.f32.mrb[0].mxu0
    %2664 = vmatprep.mubr.f32.mxu0 0.0
    %v2665 = vand.u32 %v54, 4294901760
    %2666 = vmatmul.mubr.f32.gmra.mrb[0].mxu0 %v2665
    %v2667 = vpop.f32.mrb[0].mxu0
    %v2668 = vadd.f32 %v2491, %v2667
    %v2669 = vpop.f32.mrb[0].mxu0
    %2670 = vmatprep.mubr.f32.mxu0 0.0
    %v2671 = vand.u32 %v55, 4294901760
    %2672 = vmatmul.mubr.f32.gmra.mrb[0].mxu0 %v2671
    %v2673 = vpop.f32.mrb[0].mxu0
    %v2674 = vadd.f32 %v2497, %v2673
    %v2675 = vpop.f32.mrb[0].mxu0
    %2676 = vdwg.mxu0
    %s2677 = scalar_lea.vmem [#allocation7], 128
    %2678 = vst [vmem:[%s2677] sm:$0xff] %v2584
    %2679 = vst [vmem:[%s2677 + $0x8] sm:$0xff] %v2590
    %2680 = vst [vmem:[%s2677 + $0x10] sm:$0xff] %v2596
    %2681 = vst [vmem:[%s2677 + $0x18] sm:$0xff] %v2602
    %2682 = vst [vmem:[%s2677 + $0x20] sm:$0xff] %v2608
    %2683 = vst [vmem:[%s2677 + $0x28] sm:$0xff] %v2614
    %2684 = vst [vmem:[%s2677 + $0x30] sm:$0xff] %v2620
    %2685 = vst [vmem:[%s2677 + $0x38] sm:$0xff] %v2626
    %2686 = vst [vmem:[%s2677 + $0x40] sm:$0xff] %v2632
    %2687 = vst [vmem:[%s2677 + $0x48] sm:$0xff] %v2638
    %2688 = vst [vmem:[%s2677 + $0x50] sm:$0xff] %v2644
    %2689 = vst [vmem:[%s2677 + $0x58] sm:$0xff] %v2650
    %2690 = vst [vmem:[%s2677 + $0x60] sm:$0xff] %v2656
    %2691 = vst [vmem:[%s2677 + $0x68] sm:$0xff] %v2662
    %2692 = vst [vmem:[%s2677 + $0x70] sm:$0xff] %v2668
    %2693 = vst [vmem:[%s2677 + $0x78] sm:$0xff] %v2674
    // Predicated region
    $region18: #{tpu_custom_call.1} parent=1 // pred_check
      _
    $region19: #{tpu_custom_call.1} parent=1 // pred_check_branch
      %2695 = sbr.rel (0) target = $region21
    $region20: #{tpu_custom_call.1} parent=1 // pred_region
      %s2697 = ssub.s32 4096, 4096
      %2698 = vsyncadd [#allocation4], %s2697
      %s2699 = sshll.u32 [#allocation7], 4
      %s2700 = int_to_ptr.vmem [resolvable:$true] %s2699
      %2705 = dma.vmem_to_hbm [thread:$0]  %s2700, 4096, %s2, [#allocation4], 128, 128, 8
    $region21: #{tpu_custom_call.1} parent=1 // pred_fallthru
      _
    // Predicated region
    $region22: #{tpu_custom_call.1} parent=1 // pred_check
      _
    $region23: #{tpu_custom_call.1} parent=1 // pred_check_branch
      %2707 = sbr.rel (0) target = $region25
    $region24: #{tpu_custom_call.1} parent=1 // pred_region
      %2708 = dma.done [#allocation4], 4096
    $region25: #{tpu_custom_call.1} parent=1 // pred_fallthru
      _
    %2709 = vsyncpa [#allocation3], 1
    %2710 = vsyncpa [#allocation6], 1
    %2711 = vsyncpa [#allocation4], 1

</llo_original>
